<compile_context>
chip_gen: v7x
topology: tpu7x:2x2x1
jax: 0.10.0
libtpu: 0.0.40
codegen_flags: <defaults>
</compile_context>

<pallas_src>
import jax
import jax.numpy as jnp
from jax.experimental import pallas as pl
from jax.experimental.pallas import tpu as pltpu


# Hardware-friendly padded dims (originals: 400, 300).
_H1_PAD = 512
_H2_PAD = 384
_LANE = 128
_SUBLANE = 8
_S_PACK = 16          # state-dim packing multiple (covers f32 sublane=8, bf16 pack=16)
_TILE_B_CAP = 1024    # max rows per grid step (v5e/v6e: fewer, bigger steps)
_DUAL_TC_SPLIT_B = 512  # on dual-TC chips, split into >=2 tiles once batch >= this


def _round_up(n, m):
    return ((n + m - 1) // m) * m


def _cdiv(a, b):
    return -(-a // b)


def _tensorcores_per_chip():
    """Best-effort detection of how many TensorCores one device exposes."""
    try:
        kind = jax.devices()[0].device_kind.lower()
    except Exception:
        return 1
    # v7x exposes 2 TCs per chip; v4/v5p are megacore.  v2/v3/v5e/v6e: 1 per device.
    for tag in ("7", "v4", "v5p"):
        if tag in kind:
            return 2
    return 1


def _choose_batch_tiling(b):
    """Return (b_pad, tile_b): minimal padding, generation-aware grid length."""
    b8 = max(_SUBLANE, _round_up(b, _SUBLANE))
    min_tiles = 2 if (_tensorcores_per_chip() >= 2 and b8 >= _DUAL_TC_SPLIT_B) else 1
    n_tiles = max(min_tiles, _cdiv(b8, _TILE_B_CAP))
    tile_b = _round_up(_cdiv(b8, n_tiles), _SUBLANE)
    return tile_b * n_tiles, tile_b


def _actor_kernel(scale_ref, x_ref, w1_ref, b1_ref, w2_ref, b2_ref,
                  w3_ref, b3_ref, o_ref):
    """One batch tile: 3 matmuls + ReLU + ReLU + tanh*scale, all in VMEM."""
    wdt = w1_ref.dtype                      # f32 or bf16 (matmul-operand dtype)
    scale = scale_ref[0]                    # SMEM scalar

    # NOTE: in the bf16 path the input x is also cast to bf16 at the dot (not only
    # the weights) — acceptable precision loss for a TD3 policy; accumulation and
    # all elementwise math stay f32 (v5e VPU/EUP safe).
    x = x_ref[...].astype(wdt)
    # h1 = relu(x @ W1 + b1)
    h1 = jnp.dot(x, w1_ref[...], preferred_element_type=jnp.float32)
    h1 = jnp.maximum(h1 + b1_ref[...], 0.0)
    # h2 = relu(h1 @ W2 + b2)
    h2 = jnp.dot(h1.astype(wdt), w2_ref[...], preferred_element_type=jnp.float32)
    h2 = jnp.maximum(h2 + b2_ref[...], 0.0)
    # out = tanh(h2 @ W3 + b3) * max_action   (lane-dense padded output, no masked vst)
    h3 = jnp.dot(h2.astype(wdt), w3_ref[...], preferred_element_type=jnp.float32)
    o_ref[...] = (jnp.tanh(h3 + b3_ref[...]) * scale).astype(o_ref.dtype)


def init_actor_params(key, state_dim, action_dim):
    """PyTorch-Linear-style init (U(-1/sqrt(fan_in), 1/sqrt(fan_in))), logical shapes.

    Weights are stored [in_dim, out_dim] (transpose of torch's [out, in])."""
    dims = [(state_dim, 400), (400, 300), (300, action_dim)]
    params = {}
    for i, (fan_in, fan_out) in enumerate(dims, start=1):
        key, kw, kb = jax.random.split(key, 3)
        bound = 1.0 / jnp.sqrt(float(fan_in))
        params[f"w{i}"] = jax.random.uniform(
            kw, (fan_in, fan_out), jnp.float32, minval=-bound, maxval=bound)
        params[f"b{i}"] = jax.random.uniform(
            kb, (1, fan_out), jnp.float32, minval=-bound, maxval=bound)
    return params


def pad_actor_params(params, weight_dtype=jnp.bfloat16):
    """Bake zero-padded, lane-aligned parameters once (outside the hot loop).

    Hidden widths -> 512/384, action dim -> multiple of 128, state dim -> multiple
    of 16.  Padded columns of W1/W2 get zero bias so they stay exactly zero through
    ReLU; padded rows multiply zero-padded activations, so results are exact in f32.
    Default weight dtype is bf16 (single-pass MXU, half the weight DMA); pass
    jnp.float32 for bitwise parity with the reference."""
    s = params["w1"].shape[0]
    a = params["w3"].shape[1]
    s_pad = _round_up(s, _S_PACK)
    a_pad = _round_up(max(a, _LANE), _LANE)

    def pad2(arr, rows, cols):
        return jnp.pad(arr, ((0, rows - arr.shape[0]), (0, cols - arr.shape[1])))

    return {
        "w1": pad2(params["w1"], s_pad, _H1_PAD).astype(weight_dtype),
        "b1": pad2(params["b1"], 1, _H1_PAD).astype(jnp.float32),
        "w2": pad2(params["w2"], _H1_PAD, _H2_PAD).astype(weight_dtype),
        "b2": pad2(params["b2"], 1, _H2_PAD).astype(jnp.float32),
        "w3": pad2(params["w3"], _H2_PAD, a_pad).astype(weight_dtype),
        "b3": pad2(params["b3"], 1, a_pad).astype(jnp.float32),
    }


_PIN_IDX = lambda i: (0, 0)   # weights/biases stay VMEM-resident across grid steps


def _build_specs(s_pad, h1, h2, a_pad, tile_b, pin_mode):
    def pinned(shape):
        if pin_mode is None:
            return pl.BlockSpec(shape, _PIN_IDX)
        return pl.BlockSpec(shape, _PIN_IDX, pipeline_mode=pin_mode)

    in_specs = [
        pl.BlockSpec(memory_space=pltpu.MemorySpace.SMEM),       # max_action scalar
        pl.BlockSpec((tile_b, s_pad), lambda i: (i, 0)),         # x tile (pipelined)
        pinned((s_pad, h1)),                                     # W1
        pinned((1, h1)),                                         # b1
        pinned((h1, h2)),                                        # W2
        pinned((1, h2)),                                         # b2
        pinned((h2, a_pad)),                                     # W3
        pinned((1, a_pad)),                                      # b3
    ]
    out_specs = pl.BlockSpec((tile_b, a_pad), lambda i: (i, 0))
    return in_specs, out_specs


def actor_forward(x, padded_params, max_action, action_dim):
    """Pallas forward pass.  x: [B, state_dim] f32 -> [B, action_dim] f32."""
    b, s = x.shape
    s_pad, h1 = padded_params["w1"].shape
    h2 = padded_params["w2"].shape[1]
    a_pad = padded_params["w3"].shape[1]
    assert s <= s_pad, "state_dim larger than the padded params were built for"

    # Minimal-padding, generation-aware batch tiling.
    b_pad, tile_b = _choose_batch_tiling(b)
    if b_pad != b or s_pad != s:
        x_p = jnp.pad(x, ((0, b_pad - b), (0, s_pad - s)))
    else:
        x_p = x

    scale = jnp.asarray([max_action], dtype=jnp.float32)   # traced, no recompile
    args = (scale, x_p,
            padded_params["w1"], padded_params["b1"],
            padded_params["w2"], padded_params["b2"],
            padded_params["w3"], padded_params["b3"])

    def _call(pin_mode):
        in_specs, out_specs = _build_specs(s_pad, h1, h2, a_pad, tile_b, pin_mode)
        return pl.pallas_call(
            _actor_kernel,
            out_shape=jax.ShapeDtypeStruct((b_pad, a_pad), jnp.float32),
            grid=(b_pad // tile_b,),
            in_specs=in_specs,
            out_specs=out_specs,
            compiler_params=pltpu.CompilerParams(
                dimension_semantics=("parallel",)),
        )(*args)

    try:
        # Pinned operands single-buffered: their index_map is constant, so the
        # second pipeline buffer would only waste VMEM.
        out = _call(pl.Buffered(1))
    except Exception:
        # Fallback if pipeline_mode / Buffered(1) is unsupported on this jax build.
        out = _call(None)

    return out[:b, :action_dim]


def actor_forward_ref(x, params, max_action):
    """Plain JAX reference (logical, unpadded params)."""
    h1 = jnp.maximum(x @ params["w1"] + params["b1"], 0.0)
    h2 = jnp.maximum(h1 @ params["w2"] + params["b2"], 0.0)
    return jnp.tanh(h2 @ params["w3"] + params["b3"]) * max_action


if __name__ == "__main__":
    key = jax.random.PRNGKey(0)
    state_dim, action_dim, max_action = 16, 4, 2.0
    batch = 2

    kp, kx = jax.random.split(key)
    params = init_actor_params(kp, state_dim, action_dim)
    x = jax.random.normal(kx, (batch, state_dim), jnp.float32)
    ref = actor_forward_ref(x, params, max_action)

    # Default path: bf16 weights (single-pass MXU, half the weight DMA).
    padded_bf16 = pad_actor_params(params)
    out_bf16 = jax.block_until_ready(
        actor_forward(x, padded_bf16, max_action, action_dim))
    assert out_bf16.shape == (batch, action_dim)
    assert jnp.allclose(out_bf16, ref, atol=5e-2, rtol=5e-2), "bf16 mismatch vs reference"

    # Parity path: f32 weights, numerically exact vs reference.
    padded_f32 = pad_actor_params(params, weight_dtype=jnp.float32)
    out_f32 = jax.block_until_ready(
        actor_forward(x, padded_f32, max_action, action_dim))
    assert out_f32.shape == (batch, action_dim)
    assert jnp.allclose(out_f32, ref, atol=1e-5, rtol=1e-5), "f32 mismatch vs reference"

    # Awkward batch (not a multiple of 8) exercises minimal-padding tiling + slicing.
    x2 = jax.random.normal(jax.random.PRNGKey(1), (13, state_dim), jnp.float32)
    ref2 = actor_forward_ref(x2, params, max_action)
    out2 = jax.block_until_ready(
        actor_forward(x2, padded_bf16, max_action, action_dim))
    assert out2.shape == (13, action_dim)
    assert jnp.allclose(out2, ref2, atol=5e-2, rtol=5e-2), "odd-batch mismatch vs reference"

    print("KERNEL_OK")
</pallas_src>

<mosaic_0001>
module attributes {stable_mosaic.version = 11 : i64} {
  func.func @_actor_kernel(%arg0: i32, %arg1: memref<1xf32, #tpu.memory_space<smem>>, %arg2: memref<8x16xf32, #tpu.memory_space<vmem>>, %arg3: memref<16x512xbf16, #tpu.memory_space<vmem>>, %arg4: memref<1x512xf32, #tpu.memory_space<vmem>>, %arg5: memref<512x384xbf16, #tpu.memory_space<vmem>>, %arg6: memref<1x384xf32, #tpu.memory_space<vmem>>, %arg7: memref<384x128xbf16, #tpu.memory_space<vmem>>, %arg8: memref<1x128xf32, #tpu.memory_space<vmem>>, %arg9: memref<8x128xf32, #tpu.memory_space<vmem>>) attributes {dimension_semantics = [#tpu.dimension_semantics<parallel>], iteration_bounds = array<i64: 1>, scalar_prefetch = 0 : i64, scratch_operands = 0 : i64, tpu.core_type = #tpu.core_type<tc>, window_params = [{transform_indices = @transform_0, window_bounds = array<i64: 1>}, {transform_indices = @transform_1, window_bounds = array<i64: 8, 16>}, {pipeline_mode = #tpu.pipeline_mode<synchronous>, transform_indices = @transform_2, window_bounds = array<i64: 16, 512>}, {pipeline_mode = #tpu.pipeline_mode<synchronous>, transform_indices = @transform_3, window_bounds = array<i64: 1, 512>}, {pipeline_mode = #tpu.pipeline_mode<synchronous>, transform_indices = @transform_4, window_bounds = array<i64: 512, 384>}, {pipeline_mode = #tpu.pipeline_mode<synchronous>, transform_indices = @transform_5, window_bounds = array<i64: 1, 384>}, {pipeline_mode = #tpu.pipeline_mode<synchronous>, transform_indices = @transform_6, window_bounds = array<i64: 384, 128>}, {pipeline_mode = #tpu.pipeline_mode<synchronous>, transform_indices = @transform_7, window_bounds = array<i64: 1, 128>}, {transform_indices = @transform_8, window_bounds = array<i64: 8, 128>}]} {
    %c0 = arith.constant 0 : index
    %0 = memref.load %arg1[%c0] : memref<1xf32, #tpu.memory_space<smem>>
    %c0_0 = arith.constant 0 : index
    %c0_1 = arith.constant 0 : index
    %1 = vector.load %arg2[%c0_0, %c0_1] : memref<8x16xf32, #tpu.memory_space<vmem>>, vector<8x16xf32>
    %2 = arith.truncf %1 : vector<8x16xf32> to vector<8x16xbf16>
    %c0_2 = arith.constant 0 : index
    %c0_3 = arith.constant 0 : index
    %3 = vector.load %arg3[%c0_2, %c0_3] : memref<16x512xbf16, #tpu.memory_space<vmem>>, vector<16x512xbf16>
    %cst = arith.constant dense<0.000000e+00> : vector<8x512xf32>
    %4 = tpu.matmul %2, %3, %cst {dimension_numbers = #tpu.dot_dimension_numbers<[1], [0], [0], [1], [0, 0, 1, 1], [], []>} : vector<8x16xbf16>, vector<16x512xbf16>, vector<8x512xf32> -> vector<8x512xf32>
    %c0_4 = arith.constant 0 : index
    %c0_5 = arith.constant 0 : index
    %5 = vector.load %arg4[%c0_4, %c0_5] : memref<1x512xf32, #tpu.memory_space<vmem>>, vector<1x512xf32>
    %6 = vector.broadcast %5 : vector<1x512xf32> to vector<8x512xf32>
    %7 = arith.addf %4, %6 : vector<8x512xf32>
    %cst_6 = arith.constant 0.000000e+00 : f32
    %8 = vector.broadcast %cst_6 : f32 to vector<8x512xf32>
    %9 = arith.maximumf %7, %8 : vector<8x512xf32>
    %10 = arith.truncf %9 : vector<8x512xf32> to vector<8x512xbf16>
    %c0_7 = arith.constant 0 : index
    %c0_8 = arith.constant 0 : index
    %11 = vector.load %arg5[%c0_7, %c0_8] : memref<512x384xbf16, #tpu.memory_space<vmem>>, vector<512x384xbf16>
    %cst_9 = arith.constant dense<0.000000e+00> : vector<8x384xf32>
    %12 = tpu.matmul %10, %11, %cst_9 {dimension_numbers = #tpu.dot_dimension_numbers<[1], [0], [0], [1], [0, 0, 1, 1], [], []>} : vector<8x512xbf16>, vector<512x384xbf16>, vector<8x384xf32> -> vector<8x384xf32>
    %c0_10 = arith.constant 0 : index
    %c0_11 = arith.constant 0 : index
    %13 = vector.load %arg6[%c0_10, %c0_11] : memref<1x384xf32, #tpu.memory_space<vmem>>, vector<1x384xf32>
    %14 = vector.broadcast %13 : vector<1x384xf32> to vector<8x384xf32>
    %15 = arith.addf %12, %14 : vector<8x384xf32>
    %cst_12 = arith.constant 0.000000e+00 : f32
    %16 = vector.broadcast %cst_12 : f32 to vector<8x384xf32>
    %17 = arith.maximumf %15, %16 : vector<8x384xf32>
    %18 = arith.truncf %17 : vector<8x384xf32> to vector<8x384xbf16>
    %c0_13 = arith.constant 0 : index
    %c0_14 = arith.constant 0 : index
    %19 = vector.load %arg7[%c0_13, %c0_14] : memref<384x128xbf16, #tpu.memory_space<vmem>>, vector<384x128xbf16>
    %cst_15 = arith.constant dense<0.000000e+00> : vector<8x128xf32>
    %20 = tpu.matmul %18, %19, %cst_15 {dimension_numbers = #tpu.dot_dimension_numbers<[1], [0], [0], [1], [0, 0, 1, 1], [], []>} : vector<8x384xbf16>, vector<384x128xbf16>, vector<8x128xf32> -> vector<8x128xf32>
    %c0_16 = arith.constant 0 : index
    %c0_17 = arith.constant 0 : index
    %21 = vector.load %arg8[%c0_16, %c0_17] : memref<1x128xf32, #tpu.memory_space<vmem>>, vector<1x128xf32>
    %22 = vector.broadcast %21 : vector<1x128xf32> to vector<8x128xf32>
    %23 = arith.addf %20, %22 : vector<8x128xf32>
    %24 = math.tanh %23 : vector<8x128xf32>
    %25 = vector.broadcast %0 : f32 to vector<8x128xf32>
    %26 = arith.mulf %24, %25 : vector<8x128xf32>
    %c0_18 = arith.constant 0 : index
    %c0_19 = arith.constant 0 : index
    %27 = vector.load %arg9[%c0_18, %c0_19] : memref<8x128xf32, #tpu.memory_space<vmem>>, vector<8x128xf32>
    tpu.vector_store %arg9[%c0_18, %c0_19], %26 {strides = array<i32>} : memref<8x128xf32, #tpu.memory_space<vmem>>, vector<8x128xf32>,
    return
  }
  func.func @transform_0(%arg0: i32) -> i32 {
    %c0_i32 = arith.constant 0 : i32
    %c0_i32_0 = arith.constant 0 : i32
    return %c0_i32 : i32
  }
  func.func @transform_1(%arg0: i32) -> (i32, i32) {
    %c0_i32 = arith.constant 0 : i32
    %c0_i32_0 = arith.constant 0 : i32
    return %arg0, %c0_i32 : i32, i32
  }
  func.func @transform_2(%arg0: i32) -> (i32, i32) {
    %c0_i32 = arith.constant 0 : i32
    %c0_i32_0 = arith.constant 0 : i32
    %c0_i32_1 = arith.constant 0 : i32
    return %c0_i32, %c0_i32_0 : i32, i32
  }
  func.func @transform_3(%arg0: i32) -> (i32, i32) {
    %c0_i32 = arith.constant 0 : i32
    %c0_i32_0 = arith.constant 0 : i32
    %c0_i32_1 = arith.constant 0 : i32
    return %c0_i32, %c0_i32_0 : i32, i32
  }
  func.func @transform_4(%arg0: i32) -> (i32, i32) {
    %c0_i32 = arith.constant 0 : i32
    %c0_i32_0 = arith.constant 0 : i32
    %c0_i32_1 = arith.constant 0 : i32
    return %c0_i32, %c0_i32_0 : i32, i32
  }
  func.func @transform_5(%arg0: i32) -> (i32, i32) {
    %c0_i32 = arith.constant 0 : i32
    %c0_i32_0 = arith.constant 0 : i32
    %c0_i32_1 = arith.constant 0 : i32
    return %c0_i32, %c0_i32_0 : i32, i32
  }
  func.func @transform_6(%arg0: i32) -> (i32, i32) {
    %c0_i32 = arith.constant 0 : i32
    %c0_i32_0 = arith.constant 0 : i32
    %c0_i32_1 = arith.constant 0 : i32
    return %c0_i32, %c0_i32_0 : i32, i32
  }
  func.func @transform_7(%arg0: i32) -> (i32, i32) {
    %c0_i32 = arith.constant 0 : i32
    %c0_i32_0 = arith.constant 0 : i32
    %c0_i32_1 = arith.constant 0 : i32
    return %c0_i32, %c0_i32_0 : i32, i32
  }
  func.func @transform_8(%arg0: i32) -> (i32, i32) {
    %c0_i32 = arith.constant 0 : i32
    %c0_i32_0 = arith.constant 0 : i32
    return %arg0, %c0_i32 : i32, i32
  }
}

module attributes {stable_mosaic.version = 11 : i64} {
  func.func @_actor_kernel(%arg0: i32, %arg1: memref<1xf32, #tpu.memory_space<smem>>, %arg2: memref<8x16xf32, #tpu.memory_space<vmem>>, %arg3: memref<16x512xbf16, #tpu.memory_space<vmem>>, %arg4: memref<1x512xf32, #tpu.memory_space<vmem>>, %arg5: memref<512x384xbf16, #tpu.memory_space<vmem>>, %arg6: memref<1x384xf32, #tpu.memory_space<vmem>>, %arg7: memref<384x128xbf16, #tpu.memory_space<vmem>>, %arg8: memref<1x128xf32, #tpu.memory_space<vmem>>, %arg9: memref<8x128xf32, #tpu.memory_space<vmem>>) attributes {dimension_semantics = [#tpu.dimension_semantics<parallel>], iteration_bounds = array<i64: 1>, scalar_prefetch = 0 : i64, scratch_operands = 0 : i64, tpu.core_type = #tpu.core_type<tc>, window_params = [{transform_indices = @transform_0, window_bounds = array<i64: 1>}, {transform_indices = @transform_1, window_bounds = array<i64: 8, 16>}, {pipeline_mode = #tpu.pipeline_mode<synchronous>, transform_indices = @transform_2, window_bounds = array<i64: 16, 512>}, {pipeline_mode = #tpu.pipeline_mode<synchronous>, transform_indices = @transform_3, window_bounds = array<i64: 1, 512>}, {pipeline_mode = #tpu.pipeline_mode<synchronous>, transform_indices = @transform_4, window_bounds = array<i64: 512, 384>}, {pipeline_mode = #tpu.pipeline_mode<synchronous>, transform_indices = @transform_5, window_bounds = array<i64: 1, 384>}, {pipeline_mode = #tpu.pipeline_mode<synchronous>, transform_indices = @transform_6, window_bounds = array<i64: 384, 128>}, {pipeline_mode = #tpu.pipeline_mode<synchronous>, transform_indices = @transform_7, window_bounds = array<i64: 1, 128>}, {transform_indices = @transform_8, window_bounds = array<i64: 8, 128>}]} {
    %c0 = arith.constant 0 : index
    %0 = memref.load %arg1[%c0] : memref<1xf32, #tpu.memory_space<smem>>
    %c0_0 = arith.constant 0 : index
    %c0_1 = arith.constant 0 : index
    %1 = vector.load %arg2[%c0_0, %c0_1] : memref<8x16xf32, #tpu.memory_space<vmem>>, vector<8x16xf32>
    %2 = arith.truncf %1 : vector<8x16xf32> to vector<8x16xbf16>
    %c0_2 = arith.constant 0 : index
    %c0_3 = arith.constant 0 : index
    %3 = vector.load %arg3[%c0_2, %c0_3] : memref<16x512xbf16, #tpu.memory_space<vmem>>, vector<16x512xbf16>
    %cst = arith.constant dense<0.000000e+00> : vector<8x512xf32>
    %4 = tpu.matmul %2, %3, %cst {dimension_numbers = #tpu.dot_dimension_numbers<[1], [0], [0], [1], [0, 0, 1, 1], [], []>} : vector<8x16xbf16>, vector<16x512xbf16>, vector<8x512xf32> -> vector<8x512xf32>
    %c0_4 = arith.constant 0 : index
    %c0_5 = arith.constant 0 : index
    %5 = vector.load %arg4[%c0_4, %c0_5] : memref<1x512xf32, #tpu.memory_space<vmem>>, vector<1x512xf32>
    %6 = vector.broadcast %5 : vector<1x512xf32> to vector<8x512xf32>
    %7 = arith.addf %4, %6 : vector<8x512xf32>
    %cst_6 = arith.constant 0.000000e+00 : f32
    %8 = vector.broadcast %cst_6 : f32 to vector<8x512xf32>
    %9 = arith.maximumf %7, %8 : vector<8x512xf32>
    %10 = arith.truncf %9 : vector<8x512xf32> to vector<8x512xbf16>
    %c0_7 = arith.constant 0 : index
    %c0_8 = arith.constant 0 : index
    %11 = vector.load %arg5[%c0_7, %c0_8] : memref<512x384xbf16, #tpu.memory_space<vmem>>, vector<512x384xbf16>
    %cst_9 = arith.constant dense<0.000000e+00> : vector<8x384xf32>
    %12 = tpu.matmul %10, %11, %cst_9 {dimension_numbers = #tpu.dot_dimension_numbers<[1], [0], [0], [1], [0, 0, 1, 1], [], []>} : vector<8x512xbf16>, vector<512x384xbf16>, vector<8x384xf32> -> vector<8x384xf32>
    %c0_10 = arith.constant 0 : index
    %c0_11 = arith.constant 0 : index
    %13 = vector.load %arg6[%c0_10, %c0_11] : memref<1x384xf32, #tpu.memory_space<vmem>>, vector<1x384xf32>
    %14 = vector.broadcast %13 : vector<1x384xf32> to vector<8x384xf32>
    %15 = arith.addf %12, %14 : vector<8x384xf32>
    %cst_12 = arith.constant 0.000000e+00 : f32
    %16 = vector.broadcast %cst_12 : f32 to vector<8x384xf32>
    %17 = arith.maximumf %15, %16 : vector<8x384xf32>
    %18 = arith.truncf %17 : vector<8x384xf32> to vector<8x384xbf16>
    %c0_13 = arith.constant 0 : index
    %c0_14 = arith.constant 0 : index
    %19 = vector.load %arg7[%c0_13, %c0_14] : memref<384x128xbf16, #tpu.memory_space<vmem>>, vector<384x128xbf16>
    %cst_15 = arith.constant dense<0.000000e+00> : vector<8x128xf32>
    %20 = tpu.matmul %18, %19, %cst_15 {dimension_numbers = #tpu.dot_dimension_numbers<[1], [0], [0], [1], [0, 0, 1, 1], [], []>} : vector<8x384xbf16>, vector<384x128xbf16>, vector<8x128xf32> -> vector<8x128xf32>
    %c0_16 = arith.constant 0 : index
    %c0_17 = arith.constant 0 : index
    %21 = vector.load %arg8[%c0_16, %c0_17] : memref<1x128xf32, #tpu.memory_space<vmem>>, vector<1x128xf32>
    %22 = vector.broadcast %21 : vector<1x128xf32> to vector<8x128xf32>
    %23 = arith.addf %20, %22 : vector<8x128xf32>
    %24 = math.tanh %23 : vector<8x128xf32>
    %25 = vector.broadcast %0 : f32 to vector<8x128xf32>
    %26 = arith.mulf %24, %25 : vector<8x128xf32>
    %c0_18 = arith.constant 0 : index
    %c0_19 = arith.constant 0 : index
    %27 = vector.load %arg9[%c0_18, %c0_19] : memref<8x128xf32, #tpu.memory_space<vmem>>, vector<8x128xf32>
    tpu.vector_store %arg9[%c0_18, %c0_19], %26 {strides = array<i32>} : memref<8x128xf32, #tpu.memory_space<vmem>>, vector<8x128xf32>,
    return
  }
  func.func @transform_0(%arg0: i32) -> i32 {
    %c0_i32 = arith.constant 0 : i32
    %c0_i32_0 = arith.constant 0 : i32
    return %c0_i32 : i32
  }
  func.func @transform_1(%arg0: i32) -> (i32, i32) {
    %c0_i32 = arith.constant 0 : i32
    %c0_i32_0 = arith.constant 0 : i32
    return %arg0, %c0_i32 : i32, i32
  }
  func.func @transform_2(%arg0: i32) -> (i32, i32) {
    %c0_i32 = arith.constant 0 : i32
    %c0_i32_0 = arith.constant 0 : i32
    %c0_i32_1 = arith.constant 0 : i32
    return %c0_i32, %c0_i32_0 : i32, i32
  }
  func.func @transform_3(%arg0: i32) -> (i32, i32) {
    %c0_i32 = arith.constant 0 : i32
    %c0_i32_0 = arith.constant 0 : i32
    %c0_i32_1 = arith.constant 0 : i32
    return %c0_i32, %c0_i32_0 : i32, i32
  }
  func.func @transform_4(%arg0: i32) -> (i32, i32) {
    %c0_i32 = arith.constant 0 : i32
    %c0_i32_0 = arith.constant 0 : i32
    %c0_i32_1 = arith.constant 0 : i32
    return %c0_i32, %c0_i32_0 : i32, i32
  }
  func.func @transform_5(%arg0: i32) -> (i32, i32) {
    %c0_i32 = arith.constant 0 : i32
    %c0_i32_0 = arith.constant 0 : i32
    %c0_i32_1 = arith.constant 0 : i32
    return %c0_i32, %c0_i32_0 : i32, i32
  }
  func.func @transform_6(%arg0: i32) -> (i32, i32) {
    %c0_i32 = arith.constant 0 : i32
    %c0_i32_0 = arith.constant 0 : i32
    %c0_i32_1 = arith.constant 0 : i32
    return %c0_i32, %c0_i32_0 : i32, i32
  }
  func.func @transform_7(%arg0: i32) -> (i32, i32) {
    %c0_i32 = arith.constant 0 : i32
    %c0_i32_0 = arith.constant 0 : i32
    %c0_i32_1 = arith.constant 0 : i32
    return %c0_i32, %c0_i32_0 : i32, i32
  }
  func.func @transform_8(%arg0: i32) -> (i32, i32) {
    %c0_i32 = arith.constant 0 : i32
    %c0_i32_0 = arith.constant 0 : i32
    return %arg0, %c0_i32 : i32, i32
  }
}

</mosaic_0001>

<llo_original>
// kernel: tpu_custom_call.1
$region0: #{tpu_custom_call.1}
  #allocation0 [shape = 'u32[]', space=smem, size = 0x4, offset = 0x4, fixed_abs, tag = 'smem constant byte address 0x4 - core index']
  #allocation1 [shape = 'u32[144,128]{1,0:T(1,128)}', space=vmem, size = 0x12000, scoped, tag = 'internal scratch']
  #allocation2 [shape = 'f32[1]{0:T(128)S(6)}', space=smem, size = 0x200, scoped, tag = 'scoped memory for tpu_custom_call.1']
  %s0 = inlined_call_operand.<no memory space> [shape: f32[1], index: 0, kind: input, shape index: {}]
  %s1 = inlined_call_operand.hbm [shape: f32[8,16], index: 1, kind: input, shape index: {}]
  %s2 = inlined_call_operand.hbm [shape: bf16[16,512], index: 2, kind: input, shape index: {}]
  %s3 = inlined_call_operand.vmem [shape: f32[1,512], index: 3, kind: input, shape index: {}]
  %s4 = inlined_call_operand.hbm [shape: bf16[512,384], index: 4, kind: input, shape index: {}]
  %s5 = inlined_call_operand.vmem [shape: f32[1,384], index: 5, kind: input, shape index: {}]
  %s6 = inlined_call_operand.hbm [shape: bf16[384,128], index: 6, kind: input, shape index: {}]
  %s7 = inlined_call_operand.vmem [shape: f32[1,128], index: 7, kind: input, shape index: {}]
  %s8 = inlined_call_operand.hbm [shape: f32[8,128], index: 8, kind: output, shape index: {}]
  %s9 = sld [smem:[#allocation0]]
  $region58: #{tpu_custom_call.1} parent=0
    _
  %s11 = ssub.s32 1, %s9
  %s12 = scalar_select 0, %s11, %s9
  %13 = sst [smem:[#allocation2]] %s0
  $region1: #{tpu_custom_call.1} parent=0
    #allocation3 [shape = 'u8[4096]{0}', space=vmem, size = 0x1000, scoped, tag = 'input window, operand 1, single buffered']
    #allocation4 [shape = 's32[1]{0}', space=sflag, size = 0x4, scoped, tag = 'scoped memory for tpu_custom_call.1']
    #allocation5 [shape = 's32[1]{0}', space=sflag, size = 0x4, scoped, tag = 'scoped memory for tpu_custom_call.1']
    #allocation6 [shape = 'u8[16384]{0}', space=vmem, size = 0x4000, scoped, tag = 'input window, operand 2, single buffered']
    #allocation7 [shape = 's32[1]{0}', space=sflag, size = 0x4, scoped, tag = 'scoped memory for tpu_custom_call.1']
    #allocation8 [shape = 'u8[393216]{0}', space=vmem, size = 0x60000, scoped, tag = 'input window, operand 4, single buffered']
    #allocation9 [shape = 'u8[98304]{0}', space=vmem, size = 0x18000, scoped, tag = 'input window, operand 6, single buffered']
    #allocation10 [shape = 's32[1]{0}', space=sflag, size = 0x4, scoped, tag = 'scoped memory for tpu_custom_call.1']
    #allocation11 [shape = 'u8[4096]{0}', space=vmem, size = 0x1000, scoped, tag = 'output window, operand 0, single buffered']
    %14 = vsyncpa [#allocation4], 0
    %15 = vsyncpa [#allocation7], 0
    %16 = vsyncpa [#allocation10], 0
    %17 = vsyncpa [#allocation5], 0
    // Predicated region
    $region2: #{tpu_custom_call.1} parent=1 // pred_check
      _
    $region3: #{tpu_custom_call.1} parent=1 // pred_check_branch
      %19 = sbr.rel (0) target = $region5
    $region4: #{tpu_custom_call.1} parent=1 // pred_region
      _
    $region5: #{tpu_custom_call.1} parent=1 // pred_fallthru
      _
    // Predicated region
    $region6: #{tpu_custom_call.1} parent=1 // pred_check
      _
    $region7: #{tpu_custom_call.1} parent=1 // pred_check_branch
      %21 = sbr.rel (0) target = $region9
    $region8: #{tpu_custom_call.1} parent=1 // pred_region
      %s23 = ssub.s32 128, 128
      %24 = vsyncadd [#allocation4], %s23
      %s26 = sshll.u32 [#allocation3], 4
      %s27 = int_to_ptr.vmem [resolvable:$true] %s26
      %29 = dma.hbm_to_vmem [thread:$0]  %s1, 128, %s27, [#allocation4]
    $region9: #{tpu_custom_call.1} parent=1 // pred_fallthru
      _
    // Predicated region
    $region10: #{tpu_custom_call.1} parent=1 // pred_check
      _
    $region11: #{tpu_custom_call.1} parent=1 // pred_check_branch
      %31 = sbr.rel (0) target = $region13
    $region12: #{tpu_custom_call.1} parent=1 // pred_region
      %s33 = ssub.s32 512, 512
      %34 = vsyncadd [#allocation7], %s33
      %s35 = sshll.u32 [#allocation6], 4
      %s36 = int_to_ptr.vmem [resolvable:$true] %s35
      %41 = dma.hbm_to_vmem [thread:$0]  %s2, 512, %s36, [#allocation7], 256, 256, 16
    $region13: #{tpu_custom_call.1} parent=1 // pred_fallthru
      _
    // Predicated region
    $region14: #{tpu_custom_call.1} parent=1 // pred_check
      _
    $region15: #{tpu_custom_call.1} parent=1 // pred_check_branch
      %43 = sbr.rel (0) target = $region17
    $region16: #{tpu_custom_call.1} parent=1 // pred_region
      _
    $region17: #{tpu_custom_call.1} parent=1 // pred_fallthru
      _
    // Predicated region
    $region18: #{tpu_custom_call.1} parent=1 // pred_check
      _
    $region19: #{tpu_custom_call.1} parent=1 // pred_check_branch
      %45 = sbr.rel (0) target = $region21
    $region20: #{tpu_custom_call.1} parent=1 // pred_region
      %s47 = ssub.s32 12288, 12288
      %48 = vsyncadd [#allocation7], %s47
      %s49 = sshll.u32 [#allocation8], 4
      %s50 = int_to_ptr.vmem [resolvable:$true] %s49
      %55 = dma.hbm_to_vmem [thread:$0]  %s4, 12288, %s50, [#allocation7], 192, 192, 12
    $region21: #{tpu_custom_call.1} parent=1 // pred_fallthru
      _
    // Predicated region
    $region22: #{tpu_custom_call.1} parent=1 // pred_check
      _
    $region23: #{tpu_custom_call.1} parent=1 // pred_check_branch
      %57 = sbr.rel (0) target = $region25
    $region24: #{tpu_custom_call.1} parent=1 // pred_region
      _
    $region25: #{tpu_custom_call.1} parent=1 // pred_fallthru
      _
    // Predicated region
    $region26: #{tpu_custom_call.1} parent=1 // pred_check
      _
    $region27: #{tpu_custom_call.1} parent=1 // pred_check_branch
      %59 = sbr.rel (0) target = $region29
    $region28: #{tpu_custom_call.1} parent=1 // pred_region
      %s61 = ssub.s32 3072, 3072
      %62 = vsyncadd [#allocation10], %s61
      %s63 = sshll.u32 [#allocation9], 4
      %s64 = int_to_ptr.vmem [resolvable:$true] %s63
      %69 = dma.hbm_to_vmem [thread:$0]  %s6, 3072, %s64, [#allocation10], 64, 64, 4
    $region29: #{tpu_custom_call.1} parent=1 // pred_fallthru
      _
    // Predicated region
    $region30: #{tpu_custom_call.1} parent=1 // pred_check
      _
    $region31: #{tpu_custom_call.1} parent=1 // pred_check_branch
      %71 = sbr.rel (0) target = $region33
    $region32: #{tpu_custom_call.1} parent=1 // pred_region
      _
    $region33: #{tpu_custom_call.1} parent=1 // pred_fallthru
      _
    // Predicated region
    $region34: #{tpu_custom_call.1} parent=1 // pred_check
      _
    $region35: #{tpu_custom_call.1} parent=1 // pred_check_branch
      %73 = sbr.rel (0) target = $region37
    $region36: #{tpu_custom_call.1} parent=1 // pred_region
      %74 = dma.done [#allocation4], 128
    $region37: #{tpu_custom_call.1} parent=1 // pred_fallthru
      _
    // Predicated region
    $region38: #{tpu_custom_call.1} parent=1 // pred_check
      _
    $region39: #{tpu_custom_call.1} parent=1 // pred_check_branch
      %76 = sbr.rel (0) target = $region41
    $region40: #{tpu_custom_call.1} parent=1 // pred_region
      %77 = dma.done [#allocation7], 512
    $region41: #{tpu_custom_call.1} parent=1 // pred_fallthru
      _
    // Predicated region
    $region42: #{tpu_custom_call.1} parent=1 // pred_check
      _
    $region43: #{tpu_custom_call.1} parent=1 // pred_check_branch
      %79 = sbr.rel (0) target = $region45
    $region44: #{tpu_custom_call.1} parent=1 // pred_region
      %80 = dma.done [#allocation7], 12288
    $region45: #{tpu_custom_call.1} parent=1 // pred_fallthru
      _
    // Predicated region
    $region46: #{tpu_custom_call.1} parent=1 // pred_check
      _
    $region47: #{tpu_custom_call.1} parent=1 // pred_check_branch
      %82 = sbr.rel (0) target = $region49
    $region48: #{tpu_custom_call.1} parent=1 // pred_region
      %83 = dma.done [#allocation10], 3072
    $region49: #{tpu_custom_call.1} parent=1 // pred_fallthru
      _
    %s85 = sld [smem:[#allocation2]]
    %v86 = vld [vmem:[#allocation3] sm:$0xff]
    %v87 = vpack.c.bf16 %v86, %v86
    %v88 = vld [vmem:[#allocation6] sm:$0xff]
    %v89 = vld [vmem:[#allocation6 + $0x8] sm:$0xff]
    %v90 = vld [vmem:[#allocation6 + $0x10] sm:$0xff]
    %v91 = vld [vmem:[#allocation6 + $0x18] sm:$0xff]
    %v92 = vld [vmem:[%s3] sm:$0xf]
    %v94 = vlaneseq
    %v95 = vshrl.u32 %v94, 7
    %v96 = vsub.s32 0, %v95
    %v97 = vrot.slane %v92, %v96
    %v98 = vlaneseq
    %v99 = vshrl.u32 %v98, 7
    %v100 = vsub.s32 1, %v99
    %v101 = vrot.slane %v92, %v100
    %v102 = vlaneseq
    %v103 = vshrl.u32 %v102, 7
    %v104 = vsub.s32 2, %v103
    %v105 = vrot.slane %v92, %v104
    %v106 = vlaneseq
    %v107 = vshrl.u32 %v106, 7
    %v108 = vsub.s32 3, %v107
    %v109 = vrot.slane %v92, %v108
    %v118 = vunpack.c.l.b16 %v88
    %v119 = vunpack.c.h.b16 %v88
    %v120 = vunpack.c.l.b16 %v89
    %v121 = vunpack.c.h.b16 %v89
    %v122 = vunpack.c.l.b16 %v90
    %v123 = vunpack.c.h.b16 %v90
    %v124 = vunpack.c.l.b16 %v91
    %v125 = vunpack.c.h.b16 %v91
    %v126 = vpack.c.b16 %v122, %v118
    %v127 = vpack.c.b16 %v123, %v119
    %v128 = vpack.c.b16 %v124, %v120
    %v129 = vpack.c.b16 %v125, %v121
    %vm134 = vcmask 130048
    %v136 = vsel %vm134, %v87, 0
    %138 = vmatprep.subr.bf16.mxu0 %v127
    %139 = vmatpush1.bf16.msra.mxu0 %v126
    %140 = vmatprep.subr.bf16.mxu0 0
    %141 = vmatpush1.bf16.msra.mxu0 0
    %142 = vmatprep.subr.bf16.mxu0 0
    %143 = vmatpush1.bf16.msra.mxu0 0
    %144 = vmatprep.subr.bf16.mxu0 0
    %145 = vmatpush1.bf16.msra.mxu0 0
    %146 = vmatprep.subr.bf16.mxu0 0
    %147 = vmatpush1.bf16.msra.mxu0 0
    %148 = vmatprep.subr.bf16.mxu0 0
    %149 = vmatpush1.bf16.msra.mxu0 0
    %150 = vmatprep.subr.bf16.mxu0 0
    %151 = vmatpush1.bf16.msra.mxu0 0
    %152 = vmatprep.subr.bf16.mxu0 0
    %153 = vmatpush1.bf16.msra.mxu0 0
    %154 = vmatprep.subr.bf16.mxu0 0
    %155 = vmatpush1.bf16.msra.mxu0 0
    %156 = vmatprep.subr.bf16.mxu0 0
    %157 = vmatpush1.bf16.msra.mxu0 0
    %158 = vmatprep.subr.bf16.mxu0 0
    %159 = vmatpush1.bf16.msra.mxu0 0
    %160 = vmatprep.subr.bf16.mxu0 0
    %161 = vmatpush1.bf16.msra.mxu0 0
    %162 = vmatprep.subr.bf16.mxu0 0
    %163 = vmatpush1.bf16.msra.mxu0 0
    %164 = vmatprep.subr.bf16.mxu0 0
    %165 = vmatpush1.bf16.msra.mxu0 0
    %166 = vmatprep.subr.bf16.mxu0 0
    %167 = vmatpush1.bf16.msra.mxu0 0
    %168 = vmatprep.subr.bf16.mxu0 0
    %169 = vmatpush1.bf16.msra.mxu0 0
    %170 = vmatprep.mubr.bf16.mxu0 0
    %171 = vmatmul.mubr.bf16.gmra.mrb[0].mxu0 %v136
    %v172 = vpop.f32.mrb[0].mxu0
    %v173 = vadd.f32 %v97, %v172
    %v174 = vpop.f32.mrb[0].mxu0
    %v175 = vadd.f32 %v101, %v174
    %v176 = vpop.f32.mrb[0].mxu0
    %v177 = vpop.f32.mrb[0].mxu0
    %178 = vdwg.mxu0
    %179 = vmatprep.subr.bf16.mxu0 %v129
    %180 = vmatpush1.bf16.msra.mxu0 %v128
    %181 = vmatprep.subr.bf16.mxu0 0
    %182 = vmatpush1.bf16.msra.mxu0 0
    %183 = vmatprep.subr.bf16.mxu0 0
    %184 = vmatpush1.bf16.msra.mxu0 0
    %185 = vmatprep.subr.bf16.mxu0 0
    %186 = vmatpush1.bf16.msra.mxu0 0
    %187 = vmatprep.subr.bf16.mxu0 0
    %188 = vmatpush1.bf16.msra.mxu0 0
    %189 = vmatprep.subr.bf16.mxu0 0
    %190 = vmatpush1.bf16.msra.mxu0 0
    %191 = vmatprep.subr.bf16.mxu0 0
    %192 = vmatpush1.bf16.msra.mxu0 0
    %193 = vmatprep.subr.bf16.mxu0 0
    %194 = vmatpush1.bf16.msra.mxu0 0
    %195 = vmatprep.subr.bf16.mxu0 0
    %196 = vmatpush1.bf16.msra.mxu0 0
    %197 = vmatprep.subr.bf16.mxu0 0
    %198 = vmatpush1.bf16.msra.mxu0 0
    %199 = vmatprep.subr.bf16.mxu0 0
    %200 = vmatpush1.bf16.msra.mxu0 0
    %201 = vmatprep.subr.bf16.mxu0 0
    %202 = vmatpush1.bf16.msra.mxu0 0
    %203 = vmatprep.subr.bf16.mxu0 0
    %204 = vmatpush1.bf16.msra.mxu0 0
    %205 = vmatprep.subr.bf16.mxu0 0
    %206 = vmatpush1.bf16.msra.mxu0 0
    %207 = vmatprep.subr.bf16.mxu0 0
    %208 = vmatpush1.bf16.msra.mxu0 0
    %209 = vmatprep.subr.bf16.mxu0 0
    %210 = vmatpush1.bf16.msra.mxu0 0
    %211 = vmatprep.mubr.bf16.mxu0 0
    %212 = vmatmul.mubr.bf16.gmra.mrb[0].mxu0 %v136
    %v213 = vpop.f32.mrb[0].mxu0
    %v214 = vadd.f32 %v105, %v213
    %v215 = vpop.f32.mrb[0].mxu0
    %v216 = vadd.f32 %v109, %v215
    %v217 = vpop.f32.mrb[0].mxu0
    %v218 = vpop.f32.mrb[0].mxu0
    %219 = vdwg.mxu0
    %v220 = vmax.f32 %v173, 0.0
    %v221 = vmax.f32 %v175, 0.0
    %v222 = vmax.f32 %v214, 0.0
    %v223 = vmax.f32 %v216, 0.0
    %v224 = vpack.c.bf16 %v220, %v220
    %v225 = vpack.c.bf16 %v221, %v221
    %v226 = vpack.c.bf16 %v222, %v222
    %v227 = vpack.c.bf16 %v223, %v223
    %v228 = vld [vmem:[#allocation8] sm:$0xff]
    %v229 = vld [vmem:[#allocation8 + $0x8] sm:$0xf]
    %v230 = vld [vmem:[#allocation8 + $0xc] sm:$0xff]
    %v231 = vld [vmem:[#allocation8 + $0x14] sm:$0xf]
    %v232 = vld [vmem:[#allocation8 + $0x18] sm:$0xff]
    %v233 = vld [vmem:[#allocation8 + $0x20] sm:$0xf]
    %v234 = vld [vmem:[#allocation8 + $0x24] sm:$0xff]
    %v235 = vld [vmem:[#allocation8 + $0x2c] sm:$0xf]
    %v236 = vld [vmem:[#allocation8 + $0x30] sm:$0xff]
    %v237 = vld [vmem:[#allocation8 + $0x38] sm:$0xf]
    %v238 = vld [vmem:[#allocation8 + $0x3c] sm:$0xff]
    %v239 = vld [vmem:[#allocation8 + $0x44] sm:$0xf]
    %v240 = vld [vmem:[#allocation8 + $0x48] sm:$0xff]
    %v241 = vld [vmem:[#allocation8 + $0x50] sm:$0xf]
    %v242 = vld [vmem:[#allocation8 + $0x54] sm:$0xff]
    %v243 = vld [vmem:[#allocation8 + $0x5c] sm:$0xf]
    %v244 = vld [vmem:[#allocation8 + $0x60] sm:$0xff]
    %v245 = vld [vmem:[#allocation8 + $0x68] sm:$0xf]
    %v246 = vld [vmem:[#allocation8 + $0x6c] sm:$0xff]
    %v247 = vld [vmem:[#allocation8 + $0x74] sm:$0xf]
    %v248 = vld [vmem:[#allocation8 + $0x78] sm:$0xff]
    %v249 = vld [vmem:[#allocation8 + $0x80] sm:$0xf]
    %v250 = vld [vmem:[#allocation8 + $0x84] sm:$0xff]
    %v251 = vld [vmem:[#allocation8 + $0x8c] sm:$0xf]
    %v252 = vld [vmem:[#allocation8 + $0x90] sm:$0xff]
    %v253 = vld [vmem:[#allocation8 + $0x98] sm:$0xf]
    %v254 = vld [vmem:[#allocation8 + $0x9c] sm:$0xff]
    %v255 = vld [vmem:[#allocation8 + $0xa4] sm:$0xf]
    %v256 = vld [vmem:[#allocation8 + $0xa8] sm:$0xff]
    %v257 = vld [vmem:[#allocation8 + $0xb0] sm:$0xf]
    %v258 = vld [vmem:[#allocation8 + $0xb4] sm:$0xff]
    %v259 = vld [vmem:[#allocation8 + $0xbc] sm:$0xf]
    %v260 = vld [vmem:[#allocation8 + $0xc0] sm:$0xff]
    %v261 = vld [vmem:[#allocation8 + $0xc8] sm:$0xf]
    %v262 = vld [vmem:[#allocation8 + $0xcc] sm:$0xff]
    %v263 = vld [vmem:[#allocation8 + $0xd4] sm:$0xf]
    %v264 = vld [vmem:[#allocation8 + $0xd8] sm:$0xff]
    %v265 = vld [vmem:[#allocation8 + $0xe0] sm:$0xf]
    %v266 = vld [vmem:[#allocation8 + $0xe4] sm:$0xff]
    %v267 = vld [vmem:[#allocation8 + $0xec] sm:$0xf]
    %v268 = vld [vmem:[#allocation8 + $0xf0] sm:$0xff]
    %v269 = vld [vmem:[#allocation8 + $0xf8] sm:$0xf]
    %v270 = vld [vmem:[#allocation8 + $0xfc] sm:$0xff]
    %v271 = vld [vmem:[#allocation8 + $0x104] sm:$0xf]
    %v272 = vld [vmem:[#allocation8 + $0x108] sm:$0xff]
    %v273 = vld [vmem:[#allocation8 + $0x110] sm:$0xf]
    %v274 = vld [vmem:[#allocation8 + $0x114] sm:$0xff]
    %v275 = vld [vmem:[#allocation8 + $0x11c] sm:$0xf]
    %v276 = vld [vmem:[#allocation8 + $0x120] sm:$0xff]
    %v277 = vld [vmem:[#allocation8 + $0x128] sm:$0xf]
    %v278 = vld [vmem:[#allocation8 + $0x12c] sm:$0xff]
    %v279 = vld [vmem:[#allocation8 + $0x134] sm:$0xf]
    %v280 = vld [vmem:[#allocation8 + $0x138] sm:$0xff]
    %v281 = vld [vmem:[#allocation8 + $0x140] sm:$0xf]
    %v282 = vld [vmem:[#allocation8 + $0x144] sm:$0xff]
    %v283 = vld [vmem:[#allocation8 + $0x14c] sm:$0xf]
    %v284 = vld [vmem:[#allocation8 + $0x150] sm:$0xff]
    %v285 = vld [vmem:[#allocation8 + $0x158] sm:$0xf]
    %v286 = vld [vmem:[#allocation8 + $0x15c] sm:$0xff]
    %v287 = vld [vmem:[#allocation8 + $0x164] sm:$0xf]
    %v288 = vld [vmem:[#allocation8 + $0x168] sm:$0xff]
    %v289 = vld [vmem:[#allocation8 + $0x170] sm:$0xf]
    %v290 = vld [vmem:[#allocation8 + $0x174] sm:$0xff]
    %v291 = vld [vmem:[#allocation8 + $0x17c] sm:$0xf]
    %v292 = vld [vmem:[#allocation8 + $0x180] sm:$0xff]
    %v293 = vld [vmem:[#allocation8 + $0x188] sm:$0xf]
    %v294 = vld [vmem:[#allocation8 + $0x18c] sm:$0xff]
    %v295 = vld [vmem:[#allocation8 + $0x194] sm:$0xf]
    %v296 = vld [vmem:[#allocation8 + $0x198] sm:$0xff]
    %v297 = vld [vmem:[#allocation8 + $0x1a0] sm:$0xf]
    %v298 = vld [vmem:[#allocation8 + $0x1a4] sm:$0xff]
    %v299 = vld [vmem:[#allocation8 + $0x1ac] sm:$0xf]
    %v300 = vld [vmem:[#allocation8 + $0x1b0] sm:$0xff]
    %v301 = vld [vmem:[#allocation8 + $0x1b8] sm:$0xf]
    %v302 = vld [vmem:[#allocation8 + $0x1bc] sm:$0xff]
    %v303 = vld [vmem:[#allocation8 + $0x1c4] sm:$0xf]
    %v304 = vld [vmem:[#allocation8 + $0x1c8] sm:$0xff]
    %v305 = vld [vmem:[#allocation8 + $0x1d0] sm:$0xf]
    %v306 = vld [vmem:[#allocation8 + $0x1d4] sm:$0xff]
    %v307 = vld [vmem:[#allocation8 + $0x1dc] sm:$0xf]
    %v308 = vld [vmem:[#allocation8 + $0x1e0] sm:$0xff]
    %v309 = vld [vmem:[#allocation8 + $0x1e8] sm:$0xf]
    %v310 = vld [vmem:[#allocation8 + $0x1ec] sm:$0xff]
    %v311 = vld [vmem:[#allocation8 + $0x1f4] sm:$0xf]
    %v312 = vld [vmem:[#allocation8 + $0x1f8] sm:$0xff]
    %v313 = vld [vmem:[#allocation8 + $0x200] sm:$0xf]
    %v314 = vld [vmem:[#allocation8 + $0x204] sm:$0xff]
    %v315 = vld [vmem:[#allocation8 + $0x20c] sm:$0xf]
    %v316 = vld [vmem:[#allocation8 + $0x210] sm:$0xff]
    %v317 = vld [vmem:[#allocation8 + $0x218] sm:$0xf]
    %v318 = vld [vmem:[#allocation8 + $0x21c] sm:$0xff]
    %v319 = vld [vmem:[#allocation8 + $0x224] sm:$0xf]
    %v320 = vld [vmem:[#allocation8 + $0x228] sm:$0xff]
    %v321 = vld [vmem:[#allocation8 + $0x230] sm:$0xf]
    %v322 = vld [vmem:[#allocation8 + $0x234] sm:$0xff]
    %v323 = vld [vmem:[#allocation8 + $0x23c] sm:$0xf]
    %v324 = vld [vmem:[#allocation8 + $0x240] sm:$0xff]
    %v325 = vld [vmem:[#allocation8 + $0x248] sm:$0xf]
    %v326 = vld [vmem:[#allocation8 + $0x24c] sm:$0xff]
    %v327 = vld [vmem:[#allocation8 + $0x254] sm:$0xf]
    %v328 = vld [vmem:[#allocation8 + $0x258] sm:$0xff]
    %v329 = vld [vmem:[#allocation8 + $0x260] sm:$0xf]
    %v330 = vld [vmem:[#allocation8 + $0x264] sm:$0xff]
    %v331 = vld [vmem:[#allocation8 + $0x26c] sm:$0xf]
    %v332 = vld [vmem:[#allocation8 + $0x270] sm:$0xff]
    %v333 = vld [vmem:[#allocation8 + $0x278] sm:$0xf]
    %v334 = vld [vmem:[#allocation8 + $0x27c] sm:$0xff]
    %v335 = vld [vmem:[#allocation8 + $0x284] sm:$0xf]
    %v336 = vld [vmem:[#allocation8 + $0x288] sm:$0xff]
    %v337 = vld [vmem:[#allocation8 + $0x290] sm:$0xf]
    %v338 = vld [vmem:[#allocation8 + $0x294] sm:$0xff]
    %v339 = vld [vmem:[#allocation8 + $0x29c] sm:$0xf]
    %v340 = vld [vmem:[#allocation8 + $0x2a0] sm:$0xff]
    %v341 = vld [vmem:[#allocation8 + $0x2a8] sm:$0xf]
    %v342 = vld [vmem:[#allocation8 + $0x2ac] sm:$0xff]
    %v343 = vld [vmem:[#allocation8 + $0x2b4] sm:$0xf]
    %v344 = vld [vmem:[#allocation8 + $0x2b8] sm:$0xff]
    %v345 = vld [vmem:[#allocation8 + $0x2c0] sm:$0xf]
    %v346 = vld [vmem:[#allocation8 + $0x2c4] sm:$0xff]
    %v347 = vld [vmem:[#allocation8 + $0x2cc] sm:$0xf]
    %v348 = vld [vmem:[#allocation8 + $0x2d0] sm:$0xff]
    %v349 = vld [vmem:[#allocation8 + $0x2d8] sm:$0xf]
    %v350 = vld [vmem:[#allocation8 + $0x2dc] sm:$0xff]
    %v351 = vld [vmem:[#allocation8 + $0x2e4] sm:$0xf]
    %v352 = vld [vmem:[#allocation8 + $0x2e8] sm:$0xff]
    %v353 = vld [vmem:[#allocation8 + $0x2f0] sm:$0xf]
    %v354 = vld [vmem:[#allocation8 + $0x2f4] sm:$0xff]
    %v355 = vld [vmem:[#allocation8 + $0x2fc] sm:$0xf]
    %v356 = vld [vmem:[%s5] sm:$0x7]
    %v358 = vlaneseq
    %v359 = vshrl.u32 %v358, 7
    %v360 = vsub.s32 0, %v359
    %v361 = vrot.slane %v356, %v360
    %v362 = vlaneseq
    %v363 = vshrl.u32 %v362, 7
    %v364 = vsub.s32 1, %v363
    %v365 = vrot.slane %v356, %v364
    %v366 = vlaneseq
    %v367 = vshrl.u32 %v366, 7
    %v368 = vsub.s32 2, %v367
    %v369 = vrot.slane %v356, %v368
    %v501 = vunpack.c.l.b16 %v228
    %v502 = vunpack.c.h.b16 %v228
    %v503 = vunpack.c.l.b16 %v229
    %v504 = vunpack.c.l.b16 %v230
    %v505 = vunpack.c.h.b16 %v230
    %v506 = vunpack.c.l.b16 %v231
    %v507 = vunpack.c.l.b16 %v232
    %v508 = vunpack.c.h.b16 %v232
    %v509 = vunpack.c.l.b16 %v233
    %v510 = vunpack.c.l.b16 %v234
    %v511 = vunpack.c.h.b16 %v234
    %v512 = vunpack.c.l.b16 %v235
    %v513 = vunpack.c.l.b16 %v236
    %v514 = vunpack.c.h.b16 %v236
    %v515 = vunpack.c.l.b16 %v237
    %v516 = vunpack.c.l.b16 %v238
    %v517 = vunpack.c.h.b16 %v238
    %v518 = vunpack.c.l.b16 %v239
    %v519 = vunpack.c.l.b16 %v240
    %v520 = vunpack.c.h.b16 %v240
    %v521 = vunpack.c.l.b16 %v241
    %v522 = vunpack.c.l.b16 %v242
    %v523 = vunpack.c.h.b16 %v242
    %v524 = vunpack.c.l.b16 %v243
    %v525 = vunpack.c.l.b16 %v244
    %v526 = vunpack.c.h.b16 %v244
    %v527 = vunpack.c.l.b16 %v245
    %v528 = vunpack.c.l.b16 %v246
    %v529 = vunpack.c.h.b16 %v246
    %v530 = vunpack.c.l.b16 %v247
    %v531 = vunpack.c.l.b16 %v248
    %v532 = vunpack.c.h.b16 %v248
    %v533 = vunpack.c.l.b16 %v249
    %v534 = vunpack.c.l.b16 %v250
    %v535 = vunpack.c.h.b16 %v250
    %v536 = vunpack.c.l.b16 %v251
    %v537 = vunpack.c.l.b16 %v252
    %v538 = vunpack.c.h.b16 %v252
    %v539 = vunpack.c.l.b16 %v253
    %v540 = vunpack.c.l.b16 %v254
    %v541 = vunpack.c.h.b16 %v254
    %v542 = vunpack.c.l.b16 %v255
    %v543 = vunpack.c.l.b16 %v256
    %v544 = vunpack.c.h.b16 %v256
    %v545 = vunpack.c.l.b16 %v257
    %v546 = vunpack.c.l.b16 %v258
    %v547 = vunpack.c.h.b16 %v258
    %v548 = vunpack.c.l.b16 %v259
    %v549 = vunpack.c.l.b16 %v260
    %v550 = vunpack.c.h.b16 %v260
    %v551 = vunpack.c.l.b16 %v261
    %v552 = vunpack.c.l.b16 %v262
    %v553 = vunpack.c.h.b16 %v262
    %v554 = vunpack.c.l.b16 %v263
    %v555 = vunpack.c.l.b16 %v264
    %v556 = vunpack.c.h.b16 %v264
    %v557 = vunpack.c.l.b16 %v265
    %v558 = vunpack.c.l.b16 %v266
    %v559 = vunpack.c.h.b16 %v266
    %v560 = vunpack.c.l.b16 %v267
    %v561 = vunpack.c.l.b16 %v268
    %v562 = vunpack.c.h.b16 %v268
    %v563 = vunpack.c.l.b16 %v269
    %v564 = vunpack.c.l.b16 %v270
    %v565 = vunpack.c.h.b16 %v270
    %v566 = vunpack.c.l.b16 %v271
    %v567 = vunpack.c.l.b16 %v272
    %v568 = vunpack.c.h.b16 %v272
    %v569 = vunpack.c.l.b16 %v273
    %v570 = vunpack.c.l.b16 %v274
    %v571 = vunpack.c.h.b16 %v274
    %v572 = vunpack.c.l.b16 %v275
    %v573 = vunpack.c.l.b16 %v276
    %v574 = vunpack.c.h.b16 %v276
    %v575 = vunpack.c.l.b16 %v277
    %v576 = vunpack.c.l.b16 %v278
    %v577 = vunpack.c.h.b16 %v278
    %v578 = vunpack.c.l.b16 %v279
    %v579 = vunpack.c.l.b16 %v280
    %v580 = vunpack.c.h.b16 %v280
    %v581 = vunpack.c.l.b16 %v281
    %v582 = vunpack.c.l.b16 %v282
    %v583 = vunpack.c.h.b16 %v282
    %v584 = vunpack.c.l.b16 %v283
    %v585 = vunpack.c.l.b16 %v284
    %v586 = vunpack.c.h.b16 %v284
    %v587 = vunpack.c.l.b16 %v285
    %v588 = vunpack.c.l.b16 %v286
    %v589 = vunpack.c.h.b16 %v286
    %v590 = vunpack.c.l.b16 %v287
    %v591 = vunpack.c.l.b16 %v288
    %v592 = vunpack.c.h.b16 %v288
    %v593 = vunpack.c.l.b16 %v289
    %v594 = vunpack.c.l.b16 %v290
    %v595 = vunpack.c.h.b16 %v290
    %v596 = vunpack.c.l.b16 %v291
    %v597 = vunpack.c.l.b16 %v292
    %v598 = vunpack.c.h.b16 %v292
    %v599 = vunpack.c.l.b16 %v293
    %v600 = vunpack.c.l.b16 %v294
    %v601 = vunpack.c.h.b16 %v294
    %v602 = vunpack.c.l.b16 %v295
    %v603 = vunpack.c.l.b16 %v296
    %v604 = vunpack.c.h.b16 %v296
    %v605 = vunpack.c.l.b16 %v297
    %v606 = vunpack.c.l.b16 %v298
    %v607 = vunpack.c.h.b16 %v298
    %v608 = vunpack.c.l.b16 %v299
    %v609 = vunpack.c.l.b16 %v300
    %v610 = vunpack.c.h.b16 %v300
    %v611 = vunpack.c.l.b16 %v301
    %v612 = vunpack.c.l.b16 %v302
    %v613 = vunpack.c.h.b16 %v302
    %v614 = vunpack.c.l.b16 %v303
    %v615 = vunpack.c.l.b16 %v304
    %v616 = vunpack.c.h.b16 %v304
    %v617 = vunpack.c.l.b16 %v305
    %v618 = vunpack.c.l.b16 %v306
    %v619 = vunpack.c.h.b16 %v306
    %v620 = vunpack.c.l.b16 %v307
    %v621 = vunpack.c.l.b16 %v308
    %v622 = vunpack.c.h.b16 %v308
    %v623 = vunpack.c.l.b16 %v309
    %v624 = vunpack.c.l.b16 %v310
    %v625 = vunpack.c.h.b16 %v310
    %v626 = vunpack.c.l.b16 %v311
    %v627 = vunpack.c.l.b16 %v312
    %v628 = vunpack.c.h.b16 %v312
    %v629 = vunpack.c.l.b16 %v313
    %v630 = vunpack.c.l.b16 %v314
    %v631 = vunpack.c.h.b16 %v314
    %v632 = vunpack.c.l.b16 %v315
    %v633 = vunpack.c.l.b16 %v316
    %v634 = vunpack.c.h.b16 %v316
    %v635 = vunpack.c.l.b16 %v317
    %v636 = vunpack.c.l.b16 %v318
    %v637 = vunpack.c.h.b16 %v318
    %v638 = vunpack.c.l.b16 %v319
    %v639 = vunpack.c.l.b16 %v320
    %v640 = vunpack.c.h.b16 %v320
    %v641 = vunpack.c.l.b16 %v321
    %v642 = vunpack.c.l.b16 %v322
    %v643 = vunpack.c.h.b16 %v322
    %v644 = vunpack.c.l.b16 %v323
    %v645 = vunpack.c.l.b16 %v324
    %v646 = vunpack.c.h.b16 %v324
    %v647 = vunpack.c.l.b16 %v325
    %v648 = vunpack.c.l.b16 %v326
    %v649 = vunpack.c.h.b16 %v326
    %v650 = vunpack.c.l.b16 %v327
    %v651 = vunpack.c.l.b16 %v328
    %v652 = vunpack.c.h.b16 %v328
    %v653 = vunpack.c.l.b16 %v329
    %v654 = vunpack.c.l.b16 %v330
    %v655 = vunpack.c.h.b16 %v330
    %v656 = vunpack.c.l.b16 %v331
    %v657 = vunpack.c.l.b16 %v332
    %v658 = vunpack.c.h.b16 %v332
    %v659 = vunpack.c.l.b16 %v333
    %v660 = vunpack.c.l.b16 %v334
    %v661 = vunpack.c.h.b16 %v334
    %v662 = vunpack.c.l.b16 %v335
    %v663 = vunpack.c.l.b16 %v336
    %v664 = vunpack.c.h.b16 %v336
    %v665 = vunpack.c.l.b16 %v337
    %v666 = vunpack.c.l.b16 %v338
    %v667 = vunpack.c.h.b16 %v338
    %v668 = vunpack.c.l.b16 %v339
    %v669 = vunpack.c.l.b16 %v340
    %v670 = vunpack.c.h.b16 %v340
    %v671 = vunpack.c.l.b16 %v341
    %v672 = vunpack.c.l.b16 %v342
    %v673 = vunpack.c.h.b16 %v342
    %v674 = vunpack.c.l.b16 %v343
    %v675 = vunpack.c.l.b16 %v344
    %v676 = vunpack.c.h.b16 %v344
    %v677 = vunpack.c.l.b16 %v345
    %v678 = vunpack.c.l.b16 %v346
    %v679 = vunpack.c.h.b16 %v346
    %v680 = vunpack.c.l.b16 %v347
    %v681 = vunpack.c.l.b16 %v348
    %v682 = vunpack.c.h.b16 %v348
    %v683 = vunpack.c.l.b16 %v349
    %v684 = vunpack.c.l.b16 %v350
    %v685 = vunpack.c.h.b16 %v350
    %v686 = vunpack.c.l.b16 %v351
    %v687 = vunpack.c.l.b16 %v352
    %v688 = vunpack.c.h.b16 %v352
    %v689 = vunpack.c.l.b16 %v353
    %v690 = vunpack.c.l.b16 %v354
    %v691 = vunpack.c.h.b16 %v354
    %v692 = vunpack.c.l.b16 %v355
    %v693 = vpack.c.b16 %v504, %v501
    %v694 = vpack.c.b16 %v505, %v502
    %v695 = vpack.c.b16 %v506, %v503
    %v696 = vpack.c.b16 %v510, %v507
    %v697 = vpack.c.b16 %v511, %v508
    %v698 = vpack.c.b16 %v512, %v509
    %v699 = vpack.c.b16 %v516, %v513
    %v700 = vpack.c.b16 %v517, %v514
    %v701 = vpack.c.b16 %v518, %v515
    %v702 = vpack.c.b16 %v522, %v519
    %v703 = vpack.c.b16 %v523, %v520
    %v704 = vpack.c.b16 %v524, %v521
    %v705 = vpack.c.b16 %v528, %v525
    %v706 = vpack.c.b16 %v529, %v526
    %v707 = vpack.c.b16 %v530, %v527
    %v708 = vpack.c.b16 %v534, %v531
    %v709 = vpack.c.b16 %v535, %v532
    %v710 = vpack.c.b16 %v536, %v533
    %v711 = vpack.c.b16 %v540, %v537
    %v712 = vpack.c.b16 %v541, %v538
    %v713 = vpack.c.b16 %v542, %v539
    %v714 = vpack.c.b16 %v546, %v543
    %v715 = vpack.c.b16 %v547, %v544
    %v716 = vpack.c.b16 %v548, %v545
    %v717 = vpack.c.b16 %v552, %v549
    %v718 = vpack.c.b16 %v553, %v550
    %v719 = vpack.c.b16 %v554, %v551
    %v720 = vpack.c.b16 %v558, %v555
    %v721 = vpack.c.b16 %v559, %v556
    %v722 = vpack.c.b16 %v560, %v557
    %v723 = vpack.c.b16 %v564, %v561
    %v724 = vpack.c.b16 %v565, %v562
    %v725 = vpack.c.b16 %v566, %v563
    %v726 = vpack.c.b16 %v570, %v567
    %v727 = vpack.c.b16 %v571, %v568
    %v728 = vpack.c.b16 %v572, %v569
    %v729 = vpack.c.b16 %v576, %v573
    %v730 = vpack.c.b16 %v577, %v574
    %v731 = vpack.c.b16 %v578, %v575
    %v732 = vpack.c.b16 %v582, %v579
    %v733 = vpack.c.b16 %v583, %v580
    %v734 = vpack.c.b16 %v584, %v581
    %v735 = vpack.c.b16 %v588, %v585
    %v736 = vpack.c.b16 %v589, %v586
    %v737 = vpack.c.b16 %v590, %v587
    %v738 = vpack.c.b16 %v594, %v591
    %v739 = vpack.c.b16 %v595, %v592
    %v740 = vpack.c.b16 %v596, %v593
    %v741 = vpack.c.b16 %v600, %v597
    %v742 = vpack.c.b16 %v601, %v598
    %v743 = vpack.c.b16 %v602, %v599
    %v744 = vpack.c.b16 %v606, %v603
    %v745 = vpack.c.b16 %v607, %v604
    %v746 = vpack.c.b16 %v608, %v605
    %v747 = vpack.c.b16 %v612, %v609
    %v748 = vpack.c.b16 %v613, %v610
    %v749 = vpack.c.b16 %v614, %v611
    %v750 = vpack.c.b16 %v618, %v615
    %v751 = vpack.c.b16 %v619, %v616
    %v752 = vpack.c.b16 %v620, %v617
    %v753 = vpack.c.b16 %v624, %v621
    %v754 = vpack.c.b16 %v625, %v622
    %v755 = vpack.c.b16 %v626, %v623
    %v756 = vpack.c.b16 %v630, %v627
    %v757 = vpack.c.b16 %v631, %v628
    %v758 = vpack.c.b16 %v632, %v629
    %v759 = vpack.c.b16 %v636, %v633
    %v760 = vpack.c.b16 %v637, %v634
    %v761 = vpack.c.b16 %v638, %v635
    %v762 = vpack.c.b16 %v642, %v639
    %v763 = vpack.c.b16 %v643, %v640
    %v764 = vpack.c.b16 %v644, %v641
    %v765 = vpack.c.b16 %v648, %v645
    %v766 = vpack.c.b16 %v649, %v646
    %v767 = vpack.c.b16 %v650, %v647
    %v768 = vpack.c.b16 %v654, %v651
    %v769 = vpack.c.b16 %v655, %v652
    %v770 = vpack.c.b16 %v656, %v653
    %v771 = vpack.c.b16 %v660, %v657
    %v772 = vpack.c.b16 %v661, %v658
    %v773 = vpack.c.b16 %v662, %v659
    %v774 = vpack.c.b16 %v666, %v663
    %v775 = vpack.c.b16 %v667, %v664
    %v776 = vpack.c.b16 %v668, %v665
    %v777 = vpack.c.b16 %v672, %v669
    %v778 = vpack.c.b16 %v673, %v670
    %v779 = vpack.c.b16 %v674, %v671
    %v780 = vpack.c.b16 %v678, %v675
    %v781 = vpack.c.b16 %v679, %v676
    %v782 = vpack.c.b16 %v680, %v677
    %v783 = vpack.c.b16 %v684, %v681
    %v784 = vpack.c.b16 %v685, %v682
    %v785 = vpack.c.b16 %v686, %v683
    %v786 = vpack.c.b16 %v690, %v687
    %v787 = vpack.c.b16 %v691, %v688
    %v788 = vpack.c.b16 %v692, %v689
    %885 = vmatprep.subr.bf16.mxu0 %v694
    %886 = vmatpush1.bf16.msra.mxu0 %v693
    %887 = vmatprep.subr.bf16.mxu0 %v697
    %888 = vmatpush1.bf16.msra.mxu0 %v696
    %889 = vmatprep.subr.bf16.mxu0 %v700
    %890 = vmatpush1.bf16.msra.mxu0 %v699
    %891 = vmatprep.subr.bf16.mxu0 %v703
    %892 = vmatpush1.bf16.msra.mxu0 %v702
    %893 = vmatprep.subr.bf16.mxu0 %v706
    %894 = vmatpush1.bf16.msra.mxu0 %v705
    %895 = vmatprep.subr.bf16.mxu0 %v709
    %896 = vmatpush1.bf16.msra.mxu0 %v708
    %897 = vmatprep.subr.bf16.mxu0 %v712
    %898 = vmatpush1.bf16.msra.mxu0 %v711
    %899 = vmatprep.subr.bf16.mxu0 %v715
    %900 = vmatpush1.bf16.msra.mxu0 %v714
    %901 = vmatprep.subr.bf16.mxu0 %v718
    %902 = vmatpush1.bf16.msra.mxu0 %v717
    %903 = vmatprep.subr.bf16.mxu0 %v721
    %904 = vmatpush1.bf16.msra.mxu0 %v720
    %905 = vmatprep.subr.bf16.mxu0 %v724
    %906 = vmatpush1.bf16.msra.mxu0 %v723
    %907 = vmatprep.subr.bf16.mxu0 %v727
    %908 = vmatpush1.bf16.msra.mxu0 %v726
    %909 = vmatprep.subr.bf16.mxu0 %v730
    %910 = vmatpush1.bf16.msra.mxu0 %v729
    %911 = vmatprep.subr.bf16.mxu0 %v733
    %912 = vmatpush1.bf16.msra.mxu0 %v732
    %913 = vmatprep.subr.bf16.mxu0 %v736
    %914 = vmatpush1.bf16.msra.mxu0 %v735
    %915 = vmatprep.subr.bf16.mxu0 %v739
    %916 = vmatpush1.bf16.msra.mxu0 %v738
    %917 = vmatprep.mubr.bf16.mxu0 %v225
    %918 = vmatmul.mubr.bf16.gmra.mrb[0].mxu0 %v224
    %v919 = vpop.f32.mrb[0].mxu0
    %v920 = vadd.f32 %v361, %v919
    %v921 = vpop.f32.mrb[0].mxu0
    %v922 = vadd.f32 %v365, %v921
    %v923 = vpop.f32.mrb[0].mxu0
    %v924 = vpop.f32.mrb[0].mxu0
    %925 = vdwg.mxu0
    %926 = vmatprep.subr.bf16.mxu0 %v742
    %927 = vmatpush1.bf16.msra.mxu0 %v741
    %928 = vmatprep.subr.bf16.mxu0 %v745
    %929 = vmatpush1.bf16.msra.mxu0 %v744
    %930 = vmatprep.subr.bf16.mxu0 %v748
    %931 = vmatpush1.bf16.msra.mxu0 %v747
    %932 = vmatprep.subr.bf16.mxu0 %v751
    %933 = vmatpush1.bf16.msra.mxu0 %v750
    %934 = vmatprep.subr.bf16.mxu0 %v754
    %935 = vmatpush1.bf16.msra.mxu0 %v753
    %936 = vmatprep.subr.bf16.mxu0 %v757
    %937 = vmatpush1.bf16.msra.mxu0 %v756
    %938 = vmatprep.subr.bf16.mxu0 %v760
    %939 = vmatpush1.bf16.msra.mxu0 %v759
    %940 = vmatprep.subr.bf16.mxu0 %v763
    %941 = vmatpush1.bf16.msra.mxu0 %v762
    %942 = vmatprep.subr.bf16.mxu0 %v766
    %943 = vmatpush1.bf16.msra.mxu0 %v765
    %944 = vmatprep.subr.bf16.mxu0 %v769
    %945 = vmatpush1.bf16.msra.mxu0 %v768
    %946 = vmatprep.subr.bf16.mxu0 %v772
    %947 = vmatpush1.bf16.msra.mxu0 %v771
    %948 = vmatprep.subr.bf16.mxu0 %v775
    %949 = vmatpush1.bf16.msra.mxu0 %v774
    %950 = vmatprep.subr.bf16.mxu0 %v778
    %951 = vmatpush1.bf16.msra.mxu0 %v777
    %952 = vmatprep.subr.bf16.mxu0 %v781
    %953 = vmatpush1.bf16.msra.mxu0 %v780
    %954 = vmatprep.subr.bf16.mxu0 %v784
    %955 = vmatpush1.bf16.msra.mxu0 %v783
    %956 = vmatprep.subr.bf16.mxu0 %v787
    %957 = vmatpush1.bf16.msra.mxu0 %v786
    %958 = vmatprep.mubr.bf16.mxu0 %v227
    %959 = vmatmul.mubr.bf16.gmra.mrb[0].mxu0 %v226
    %v960 = vpop.f32.mrb[0].mxu0
    %v961 = vadd.f32 %v920, %v960
    %v962 = vpop.f32.mrb[0].mxu0
    %v963 = vadd.f32 %v922, %v962
    %v964 = vpop.f32.mrb[0].mxu0
    %v965 = vpop.f32.mrb[0].mxu0
    %966 = vdwg.mxu0
    %967 = vmatprep.subr.bf16.mxu0 0
    %968 = vmatpush1.bf16.msra.mxu0 %v695
    %969 = vmatprep.subr.bf16.mxu0 0
    %970 = vmatpush1.bf16.msra.mxu0 %v698
    %971 = vmatprep.subr.bf16.mxu0 0
    %972 = vmatpush1.bf16.msra.mxu0 %v701
    %973 = vmatprep.subr.bf16.mxu0 0
    %974 = vmatpush1.bf16.msra.mxu0 %v704
    %975 = vmatprep.subr.bf16.mxu0 0
    %976 = vmatpush1.bf16.msra.mxu0 %v707
    %977 = vmatprep.subr.bf16.mxu0 0
    %978 = vmatpush1.bf16.msra.mxu0 %v710
    %979 = vmatprep.subr.bf16.mxu0 0
    %980 = vmatpush1.bf16.msra.mxu0 %v713
    %981 = vmatprep.subr.bf16.mxu0 0
    %982 = vmatpush1.bf16.msra.mxu0 %v716
    %983 = vmatprep.subr.bf16.mxu0 0
    %984 = vmatpush1.bf16.msra.mxu0 %v719
    %985 = vmatprep.subr.bf16.mxu0 0
    %986 = vmatpush1.bf16.msra.mxu0 %v722
    %987 = vmatprep.subr.bf16.mxu0 0
    %988 = vmatpush1.bf16.msra.mxu0 %v725
    %989 = vmatprep.subr.bf16.mxu0 0
    %990 = vmatpush1.bf16.msra.mxu0 %v728
    %991 = vmatprep.subr.bf16.mxu0 0
    %992 = vmatpush1.bf16.msra.mxu0 %v731
    %993 = vmatprep.subr.bf16.mxu0 0
    %994 = vmatpush1.bf16.msra.mxu0 %v734
    %995 = vmatprep.subr.bf16.mxu0 0
    %996 = vmatpush1.bf16.msra.mxu0 %v737
    %997 = vmatprep.subr.bf16.mxu0 0
    %998 = vmatpush1.bf16.msra.mxu0 %v740
    %999 = vmatprep.mubr.bf16.mxu0 %v225
    %1000 = vmatmul.mubr.bf16.gmra.mrb[0].mxu0 %v224
    %v1001 = vpop.f32.mrb[0].mxu0
    %v1002 = vadd.f32 %v369, %v1001
    %v1003 = vpop.f32.mrb[0].mxu0
    %v1004 = vpop.f32.mrb[0].mxu0
    %v1005 = vpop.f32.mrb[0].mxu0
    %1006 = vdwg.mxu0
    %1007 = vmatprep.subr.bf16.mxu0 0
    %1008 = vmatpush1.bf16.msra.mxu0 %v743
    %1009 = vmatprep.subr.bf16.mxu0 0
    %1010 = vmatpush1.bf16.msra.mxu0 %v746
    %1011 = vmatprep.subr.bf16.mxu0 0
    %1012 = vmatpush1.bf16.msra.mxu0 %v749
    %1013 = vmatprep.subr.bf16.mxu0 0
    %1014 = vmatpush1.bf16.msra.mxu0 %v752
    %1015 = vmatprep.subr.bf16.mxu0 0
    %1016 = vmatpush1.bf16.msra.mxu0 %v755
    %1017 = vmatprep.subr.bf16.mxu0 0
    %1018 = vmatpush1.bf16.msra.mxu0 %v758
    %1019 = vmatprep.subr.bf16.mxu0 0
    %1020 = vmatpush1.bf16.msra.mxu0 %v761
    %1021 = vmatprep.subr.bf16.mxu0 0
    %1022 = vmatpush1.bf16.msra.mxu0 %v764
    %1023 = vmatprep.subr.bf16.mxu0 0
    %1024 = vmatpush1.bf16.msra.mxu0 %v767
    %1025 = vmatprep.subr.bf16.mxu0 0
    %1026 = vmatpush1.bf16.msra.mxu0 %v770
    %1027 = vmatprep.subr.bf16.mxu0 0
    %1028 = vmatpush1.bf16.msra.mxu0 %v773
    %1029 = vmatprep.subr.bf16.mxu0 0
    %1030 = vmatpush1.bf16.msra.mxu0 %v776
    %1031 = vmatprep.subr.bf16.mxu0 0
    %1032 = vmatpush1.bf16.msra.mxu0 %v779
    %1033 = vmatprep.subr.bf16.mxu0 0
    %1034 = vmatpush1.bf16.msra.mxu0 %v782
    %1035 = vmatprep.subr.bf16.mxu0 0
    %1036 = vmatpush1.bf16.msra.mxu0 %v785
    %1037 = vmatprep.subr.bf16.mxu0 0
    %1038 = vmatpush1.bf16.msra.mxu0 %v788
    %1039 = vmatprep.mubr.bf16.mxu0 %v227
    %1040 = vmatmul.mubr.bf16.gmra.mrb[0].mxu0 %v226
    %v1041 = vpop.f32.mrb[0].mxu0
    %v1042 = vadd.f32 %v1002, %v1041
    %v1043 = vpop.f32.mrb[0].mxu0
    %v1044 = vpop.f32.mrb[0].mxu0
    %v1045 = vpop.f32.mrb[0].mxu0
    %1046 = vdwg.mxu0
    %v1047 = vmax.f32 %v961, 0.0
    %v1048 = vmax.f32 %v963, 0.0
    %v1049 = vmax.f32 %v1042, 0.0
    %v1050 = vpack.c.bf16 %v1047, %v1047
    %v1051 = vpack.c.bf16 %v1048, %v1048
    %v1052 = vpack.c.bf16 %v1049, %v1049
    %v1053 = vld [vmem:[#allocation9] sm:$0xf]
    %v1054 = vld [vmem:[#allocation9 + $0x4] sm:$0xf]
    %v1055 = vld [vmem:[#allocation9 + $0x8] sm:$0xf]
    %v1056 = vld [vmem:[#allocation9 + $0xc] sm:$0xf]
    %v1057 = vld [vmem:[#allocation9 + $0x10] sm:$0xf]
    %v1058 = vld [vmem:[#allocation9 + $0x14] sm:$0xf]
    %v1059 = vld [vmem:[#allocation9 + $0x18] sm:$0xf]
    %v1060 = vld [vmem:[#allocation9 + $0x1c] sm:$0xf]
    %v1061 = vld [vmem:[#allocation9 + $0x20] sm:$0xf]
    %v1062 = vld [vmem:[#allocation9 + $0x24] sm:$0xf]
    %v1063 = vld [vmem:[#allocation9 + $0x28] sm:$0xf]
    %v1064 = vld [vmem:[#allocation9 + $0x2c] sm:$0xf]
    %v1065 = vld [vmem:[#allocation9 + $0x30] sm:$0xf]
    %v1066 = vld [vmem:[#allocation9 + $0x34] sm:$0xf]
    %v1067 = vld [vmem:[#allocation9 + $0x38] sm:$0xf]
    %v1068 = vld [vmem:[#allocation9 + $0x3c] sm:$0xf]
    %v1069 = vld [vmem:[#allocation9 + $0x40] sm:$0xf]
    %v1070 = vld [vmem:[#allocation9 + $0x44] sm:$0xf]
    %v1071 = vld [vmem:[#allocation9 + $0x48] sm:$0xf]
    %v1072 = vld [vmem:[#allocation9 + $0x4c] sm:$0xf]
    %v1073 = vld [vmem:[#allocation9 + $0x50] sm:$0xf]
    %v1074 = vld [vmem:[#allocation9 + $0x54] sm:$0xf]
    %v1075 = vld [vmem:[#allocation9 + $0x58] sm:$0xf]
    %v1076 = vld [vmem:[#allocation9 + $0x5c] sm:$0xf]
    %v1077 = vld [vmem:[#allocation9 + $0x60] sm:$0xf]
    %v1078 = vld [vmem:[#allocation9 + $0x64] sm:$0xf]
    %v1079 = vld [vmem:[#allocation9 + $0x68] sm:$0xf]
    %v1080 = vld [vmem:[#allocation9 + $0x6c] sm:$0xf]
    %v1081 = vld [vmem:[#allocation9 + $0x70] sm:$0xf]
    %v1082 = vld [vmem:[#allocation9 + $0x74] sm:$0xf]
    %v1083 = vld [vmem:[#allocation9 + $0x78] sm:$0xf]
    %v1084 = vld [vmem:[#allocation9 + $0x7c] sm:$0xf]
    %v1085 = vld [vmem:[#allocation9 + $0x80] sm:$0xf]
    %v1086 = vld [vmem:[#allocation9 + $0x84] sm:$0xf]
    %v1087 = vld [vmem:[#allocation9 + $0x88] sm:$0xf]
    %v1088 = vld [vmem:[#allocation9 + $0x8c] sm:$0xf]
    %v1089 = vld [vmem:[#allocation9 + $0x90] sm:$0xf]
    %v1090 = vld [vmem:[#allocation9 + $0x94] sm:$0xf]
    %v1091 = vld [vmem:[#allocation9 + $0x98] sm:$0xf]
    %v1092 = vld [vmem:[#allocation9 + $0x9c] sm:$0xf]
    %v1093 = vld [vmem:[#allocation9 + $0xa0] sm:$0xf]
    %v1094 = vld [vmem:[#allocation9 + $0xa4] sm:$0xf]
    %v1095 = vld [vmem:[#allocation9 + $0xa8] sm:$0xf]
    %v1096 = vld [vmem:[#allocation9 + $0xac] sm:$0xf]
    %v1097 = vld [vmem:[#allocation9 + $0xb0] sm:$0xf]
    %v1098 = vld [vmem:[#allocation9 + $0xb4] sm:$0xf]
    %v1099 = vld [vmem:[#allocation9 + $0xb8] sm:$0xf]
    %v1100 = vld [vmem:[#allocation9 + $0xbc] sm:$0xf]
    %v1101 = vld [vmem:[%s7] sm:$0x1]
    %v1103 = vlaneseq
    %v1104 = vshrl.u32 %v1103, 7
    %v1105 = vsub.s32 0, %v1104
    %v1106 = vrot.slane %v1101, %v1105
    %v1156 = vunpack.c.l.b16 %v1053
    %v1157 = vunpack.c.l.b16 %v1054
    %v1158 = vunpack.c.l.b16 %v1055
    %v1159 = vunpack.c.l.b16 %v1056
    %v1160 = vunpack.c.l.b16 %v1057
    %v1161 = vunpack.c.l.b16 %v1058
    %v1162 = vunpack.c.l.b16 %v1059
    %v1163 = vunpack.c.l.b16 %v1060
    %v1164 = vunpack.c.l.b16 %v1061
    %v1165 = vunpack.c.l.b16 %v1062
    %v1166 = vunpack.c.l.b16 %v1063
    %v1167 = vunpack.c.l.b16 %v1064
    %v1168 = vunpack.c.l.b16 %v1065
    %v1169 = vunpack.c.l.b16 %v1066
    %v1170 = vunpack.c.l.b16 %v1067
    %v1171 = vunpack.c.l.b16 %v1068
    %v1172 = vunpack.c.l.b16 %v1069
    %v1173 = vunpack.c.l.b16 %v1070
    %v1174 = vunpack.c.l.b16 %v1071
    %v1175 = vunpack.c.l.b16 %v1072
    %v1176 = vunpack.c.l.b16 %v1073
    %v1177 = vunpack.c.l.b16 %v1074
    %v1178 = vunpack.c.l.b16 %v1075
    %v1179 = vunpack.c.l.b16 %v1076
    %v1180 = vunpack.c.l.b16 %v1077
    %v1181 = vunpack.c.l.b16 %v1078
    %v1182 = vunpack.c.l.b16 %v1079
    %v1183 = vunpack.c.l.b16 %v1080
    %v1184 = vunpack.c.l.b16 %v1081
    %v1185 = vunpack.c.l.b16 %v1082
    %v1186 = vunpack.c.l.b16 %v1083
    %v1187 = vunpack.c.l.b16 %v1084
    %v1188 = vunpack.c.l.b16 %v1085
    %v1189 = vunpack.c.l.b16 %v1086
    %v1190 = vunpack.c.l.b16 %v1087
    %v1191 = vunpack.c.l.b16 %v1088
    %v1192 = vunpack.c.l.b16 %v1089
    %v1193 = vunpack.c.l.b16 %v1090
    %v1194 = vunpack.c.l.b16 %v1091
    %v1195 = vunpack.c.l.b16 %v1092
    %v1196 = vunpack.c.l.b16 %v1093
    %v1197 = vunpack.c.l.b16 %v1094
    %v1198 = vunpack.c.l.b16 %v1095
    %v1199 = vunpack.c.l.b16 %v1096
    %v1200 = vunpack.c.l.b16 %v1097
    %v1201 = vunpack.c.l.b16 %v1098
    %v1202 = vunpack.c.l.b16 %v1099
    %v1203 = vunpack.c.l.b16 %v1100
    %v1204 = vpack.c.b16 %v1157, %v1156
    %v1205 = vpack.c.b16 %v1159, %v1158
    %v1206 = vpack.c.b16 %v1161, %v1160
    %v1207 = vpack.c.b16 %v1163, %v1162
    %v1208 = vpack.c.b16 %v1165, %v1164
    %v1209 = vpack.c.b16 %v1167, %v1166
    %v1210 = vpack.c.b16 %v1169, %v1168
    %v1211 = vpack.c.b16 %v1171, %v1170
    %v1212 = vpack.c.b16 %v1173, %v1172
    %v1213 = vpack.c.b16 %v1175, %v1174
    %v1214 = vpack.c.b16 %v1177, %v1176
    %v1215 = vpack.c.b16 %v1179, %v1178
    %v1216 = vpack.c.b16 %v1181, %v1180
    %v1217 = vpack.c.b16 %v1183, %v1182
    %v1218 = vpack.c.b16 %v1185, %v1184
    %v1219 = vpack.c.b16 %v1187, %v1186
    %v1220 = vpack.c.b16 %v1189, %v1188
    %v1221 = vpack.c.b16 %v1191, %v1190
    %v1222 = vpack.c.b16 %v1193, %v1192
    %v1223 = vpack.c.b16 %v1195, %v1194
    %v1224 = vpack.c.b16 %v1197, %v1196
    %v1225 = vpack.c.b16 %v1199, %v1198
    %v1226 = vpack.c.b16 %v1201, %v1200
    %v1227 = vpack.c.b16 %v1203, %v1202
    %1252 = vmatprep.subr.bf16.mxu0 0
    %1253 = vmatpush1.bf16.msra.mxu0 %v1204
    %1254 = vmatprep.subr.bf16.mxu0 0
    %1255 = vmatpush1.bf16.msra.mxu0 %v1205
    %1256 = vmatprep.subr.bf16.mxu0 0
    %1257 = vmatpush1.bf16.msra.mxu0 %v1206
    %1258 = vmatprep.subr.bf16.mxu0 0
    %1259 = vmatpush1.bf16.msra.mxu0 %v1207
    %1260 = vmatprep.subr.bf16.mxu0 0
    %1261 = vmatpush1.bf16.msra.mxu0 %v1208
    %1262 = vmatprep.subr.bf16.mxu0 0
    %1263 = vmatpush1.bf16.msra.mxu0 %v1209
    %1264 = vmatprep.subr.bf16.mxu0 0
    %1265 = vmatpush1.bf16.msra.mxu0 %v1210
    %1266 = vmatprep.subr.bf16.mxu0 0
    %1267 = vmatpush1.bf16.msra.mxu0 %v1211
    %1268 = vmatprep.subr.bf16.mxu0 0
    %1269 = vmatpush1.bf16.msra.mxu0 %v1212
    %1270 = vmatprep.subr.bf16.mxu0 0
    %1271 = vmatpush1.bf16.msra.mxu0 %v1213
    %1272 = vmatprep.subr.bf16.mxu0 0
    %1273 = vmatpush1.bf16.msra.mxu0 %v1214
    %1274 = vmatprep.subr.bf16.mxu0 0
    %1275 = vmatpush1.bf16.msra.mxu0 %v1215
    %1276 = vmatprep.subr.bf16.mxu0 0
    %1277 = vmatpush1.bf16.msra.mxu0 %v1216
    %1278 = vmatprep.subr.bf16.mxu0 0
    %1279 = vmatpush1.bf16.msra.mxu0 %v1217
    %1280 = vmatprep.subr.bf16.mxu0 0
    %1281 = vmatpush1.bf16.msra.mxu0 %v1218
    %1282 = vmatprep.subr.bf16.mxu0 0
    %1283 = vmatpush1.bf16.msra.mxu0 %v1219
    %1284 = vmatprep.mubr.bf16.mxu0 %v1051
    %1285 = vmatmul.mubr.bf16.gmra.mrb[0].mxu0 %v1050
    %v1286 = vpop.f32.mrb[0].mxu0
    %v1287 = vadd.f32 %v1106, %v1286
    %v1288 = vpop.f32.mrb[0].mxu0
    %v1289 = vpop.f32.mrb[0].mxu0
    %v1290 = vpop.f32.mrb[0].mxu0
    %1291 = vdwg.mxu0
    %1292 = vmatprep.subr.bf16.mxu0 0
    %1293 = vmatpush1.bf16.msra.mxu0 %v1220
    %1294 = vmatprep.subr.bf16.mxu0 0
    %1295 = vmatpush1.bf16.msra.mxu0 %v1221
    %1296 = vmatprep.subr.bf16.mxu0 0
    %1297 = vmatpush1.bf16.msra.mxu0 %v1222
    %1298 = vmatprep.subr.bf16.mxu0 0
    %1299 = vmatpush1.bf16.msra.mxu0 %v1223
    %1300 = vmatprep.subr.bf16.mxu0 0
    %1301 = vmatpush1.bf16.msra.mxu0 %v1224
    %1302 = vmatprep.subr.bf16.mxu0 0
    %1303 = vmatpush1.bf16.msra.mxu0 %v1225
    %1304 = vmatprep.subr.bf16.mxu0 0
    %1305 = vmatpush1.bf16.msra.mxu0 %v1226
    %1306 = vmatprep.subr.bf16.mxu0 0
    %1307 = vmatpush1.bf16.msra.mxu0 %v1227
    %1308 = vmatprep.subr.bf16.mxu0 0
    %1309 = vmatpush1.bf16.msra.mxu0 0
    %1310 = vmatprep.subr.bf16.mxu0 0
    %1311 = vmatpush1.bf16.msra.mxu0 0
    %1312 = vmatprep.subr.bf16.mxu0 0
    %1313 = vmatpush1.bf16.msra.mxu0 0
    %1314 = vmatprep.subr.bf16.mxu0 0
    %1315 = vmatpush1.bf16.msra.mxu0 0
    %1316 = vmatprep.subr.bf16.mxu0 0
    %1317 = vmatpush1.bf16.msra.mxu0 0
    %1318 = vmatprep.subr.bf16.mxu0 0
    %1319 = vmatpush1.bf16.msra.mxu0 0
    %1320 = vmatprep.subr.bf16.mxu0 0
    %1321 = vmatpush1.bf16.msra.mxu0 0
    %1322 = vmatprep.subr.bf16.mxu0 0
    %1323 = vmatpush1.bf16.msra.mxu0 0
    %1324 = vmatprep.mubr.bf16.mxu0 0
    %1325 = vmatmul.mubr.bf16.gmra.mrb[0].mxu0 %v1052
    %v1326 = vpop.f32.mrb[0].mxu0
    %v1327 = vadd.f32 %v1287, %v1326
    %v1328 = vpop.f32.mrb[0].mxu0
    %v1329 = vpop.f32.mrb[0].mxu0
    %v1330 = vpop.f32.mrb[0].mxu0
    %1331 = vdwg.mxu0
    %v1332 = vtanh.pop %v1327
    %v1333 = vstv %s85
    %v1334 = vmul.f32 %v1332, %v1333
    %1335 = vst [vmem:[#allocation11] sm:$0xff] %v1334
    // Predicated region
    $region50: #{tpu_custom_call.1} parent=1 // pred_check
      _
    $region51: #{tpu_custom_call.1} parent=1 // pred_check_branch
      %1337 = sbr.rel (0) target = $region53
    $region52: #{tpu_custom_call.1} parent=1 // pred_region
      %s1339 = ssub.s32 128, 128
      %1340 = vsyncadd [#allocation5], %s1339
      %s1342 = sshll.u32 [#allocation11], 4
      %s1343 = int_to_ptr.vmem [resolvable:$true] %s1342
      %1345 = dma.vmem_to_hbm [thread:$0]  %s1343, 128, %s8, [#allocation5]
    $region53: #{tpu_custom_call.1} parent=1 // pred_fallthru
      _
    // Predicated region
    $region54: #{tpu_custom_call.1} parent=1 // pred_check
      _
    $region55: #{tpu_custom_call.1} parent=1 // pred_check_branch
      %1347 = sbr.rel (0) target = $region57
    $region56: #{tpu_custom_call.1} parent=1 // pred_region
      %1348 = dma.done [#allocation5], 128
    $region57: #{tpu_custom_call.1} parent=1 // pred_fallthru
      _
    %1349 = vsyncpa [#allocation4], 1
    %1350 = vsyncpa [#allocation7], 1
    %1351 = vsyncpa [#allocation10], 1
    %1352 = vsyncpa [#allocation5], 1

// kernel: tpu_custom_call.1
$region0: #{tpu_custom_call.1}
  #allocation0 [shape = 'u32[]', space=smem, size = 0x4, offset = 0x4, fixed_abs, tag = 'smem constant byte address 0x4 - core index']
  #allocation1 [shape = 'u32[144,128]{1,0:T(1,128)}', space=vmem, size = 0x12000, scoped, tag = 'internal scratch']
  #allocation2 [shape = 'f32[1]{0:T(128)S(6)}', space=smem, size = 0x200, scoped, tag = 'scoped memory for tpu_custom_call.1']
  %s0 = inlined_call_operand.<no memory space> [shape: f32[1], index: 0, kind: input, shape index: {}]
  %s1 = inlined_call_operand.hbm [shape: f32[8,16], index: 1, kind: input, shape index: {}]
  %s2 = inlined_call_operand.hbm [shape: bf16[16,512], index: 2, kind: input, shape index: {}]
  %s3 = inlined_call_operand.vmem [shape: f32[1,512], index: 3, kind: input, shape index: {}]
  %s4 = inlined_call_operand.hbm [shape: bf16[512,384], index: 4, kind: input, shape index: {}]
  %s5 = inlined_call_operand.vmem [shape: f32[1,384], index: 5, kind: input, shape index: {}]
  %s6 = inlined_call_operand.hbm [shape: bf16[384,128], index: 6, kind: input, shape index: {}]
  %s7 = inlined_call_operand.vmem [shape: f32[1,128], index: 7, kind: input, shape index: {}]
  %s8 = inlined_call_operand.hbm [shape: f32[8,128], index: 8, kind: output, shape index: {}]
  %s9 = sld [smem:[#allocation0]]
  $region58: #{tpu_custom_call.1} parent=0
    _
  %s11 = ssub.s32 1, %s9
  %s12 = scalar_select 0, %s11, %s9
  %13 = sst [smem:[#allocation2]] %s0
  $region1: #{tpu_custom_call.1} parent=0
    #allocation3 [shape = 'u8[4096]{0}', space=vmem, size = 0x1000, scoped, tag = 'input window, operand 1, single buffered']
    #allocation4 [shape = 's32[1]{0}', space=sflag, size = 0x4, scoped, tag = 'scoped memory for tpu_custom_call.1']
    #allocation5 [shape = 's32[1]{0}', space=sflag, size = 0x4, scoped, tag = 'scoped memory for tpu_custom_call.1']
    #allocation6 [shape = 'u8[16384]{0}', space=vmem, size = 0x4000, scoped, tag = 'input window, operand 2, single buffered']
    #allocation7 [shape = 's32[1]{0}', space=sflag, size = 0x4, scoped, tag = 'scoped memory for tpu_custom_call.1']
    #allocation8 [shape = 'u8[393216]{0}', space=vmem, size = 0x60000, scoped, tag = 'input window, operand 4, single buffered']
    #allocation9 [shape = 'u8[98304]{0}', space=vmem, size = 0x18000, scoped, tag = 'input window, operand 6, single buffered']
    #allocation10 [shape = 's32[1]{0}', space=sflag, size = 0x4, scoped, tag = 'scoped memory for tpu_custom_call.1']
    #allocation11 [shape = 'u8[4096]{0}', space=vmem, size = 0x1000, scoped, tag = 'output window, operand 0, single buffered']
    %14 = vsyncpa [#allocation4], 0
    %15 = vsyncpa [#allocation7], 0
    %16 = vsyncpa [#allocation10], 0
    %17 = vsyncpa [#allocation5], 0
    // Predicated region
    $region2: #{tpu_custom_call.1} parent=1 // pred_check
      _
    $region3: #{tpu_custom_call.1} parent=1 // pred_check_branch
      %19 = sbr.rel (0) target = $region5
    $region4: #{tpu_custom_call.1} parent=1 // pred_region
      _
    $region5: #{tpu_custom_call.1} parent=1 // pred_fallthru
      _
    // Predicated region
    $region6: #{tpu_custom_call.1} parent=1 // pred_check
      _
    $region7: #{tpu_custom_call.1} parent=1 // pred_check_branch
      %21 = sbr.rel (0) target = $region9
    $region8: #{tpu_custom_call.1} parent=1 // pred_region
      %s23 = ssub.s32 128, 128
      %24 = vsyncadd [#allocation4], %s23
      %s26 = sshll.u32 [#allocation3], 4
      %s27 = int_to_ptr.vmem [resolvable:$true] %s26
      %29 = dma.hbm_to_vmem [thread:$0]  %s1, 128, %s27, [#allocation4]
    $region9: #{tpu_custom_call.1} parent=1 // pred_fallthru
      _
    // Predicated region
    $region10: #{tpu_custom_call.1} parent=1 // pred_check
      _
    $region11: #{tpu_custom_call.1} parent=1 // pred_check_branch
      %31 = sbr.rel (0) target = $region13
    $region12: #{tpu_custom_call.1} parent=1 // pred_region
      %s33 = ssub.s32 512, 512
      %34 = vsyncadd [#allocation7], %s33
      %s35 = sshll.u32 [#allocation6], 4
      %s36 = int_to_ptr.vmem [resolvable:$true] %s35
      %41 = dma.hbm_to_vmem [thread:$0]  %s2, 512, %s36, [#allocation7], 256, 256, 16
    $region13: #{tpu_custom_call.1} parent=1 // pred_fallthru
      _
    // Predicated region
    $region14: #{tpu_custom_call.1} parent=1 // pred_check
      _
    $region15: #{tpu_custom_call.1} parent=1 // pred_check_branch
      %43 = sbr.rel (0) target = $region17
    $region16: #{tpu_custom_call.1} parent=1 // pred_region
      _
    $region17: #{tpu_custom_call.1} parent=1 // pred_fallthru
      _
    // Predicated region
    $region18: #{tpu_custom_call.1} parent=1 // pred_check
      _
    $region19: #{tpu_custom_call.1} parent=1 // pred_check_branch
      %45 = sbr.rel (0) target = $region21
    $region20: #{tpu_custom_call.1} parent=1 // pred_region
      %s47 = ssub.s32 12288, 12288
      %48 = vsyncadd [#allocation7], %s47
      %s49 = sshll.u32 [#allocation8], 4
      %s50 = int_to_ptr.vmem [resolvable:$true] %s49
      %55 = dma.hbm_to_vmem [thread:$0]  %s4, 12288, %s50, [#allocation7], 192, 192, 12
    $region21: #{tpu_custom_call.1} parent=1 // pred_fallthru
      _
    // Predicated region
    $region22: #{tpu_custom_call.1} parent=1 // pred_check
      _
    $region23: #{tpu_custom_call.1} parent=1 // pred_check_branch
      %57 = sbr.rel (0) target = $region25
    $region24: #{tpu_custom_call.1} parent=1 // pred_region
      _
    $region25: #{tpu_custom_call.1} parent=1 // pred_fallthru
      _
    // Predicated region
    $region26: #{tpu_custom_call.1} parent=1 // pred_check
      _
    $region27: #{tpu_custom_call.1} parent=1 // pred_check_branch
      %59 = sbr.rel (0) target = $region29
    $region28: #{tpu_custom_call.1} parent=1 // pred_region
      %s61 = ssub.s32 3072, 3072
      %62 = vsyncadd [#allocation10], %s61
      %s63 = sshll.u32 [#allocation9], 4
      %s64 = int_to_ptr.vmem [resolvable:$true] %s63
      %69 = dma.hbm_to_vmem [thread:$0]  %s6, 3072, %s64, [#allocation10], 64, 64, 4
    $region29: #{tpu_custom_call.1} parent=1 // pred_fallthru
      _
    // Predicated region
    $region30: #{tpu_custom_call.1} parent=1 // pred_check
      _
    $region31: #{tpu_custom_call.1} parent=1 // pred_check_branch
      %71 = sbr.rel (0) target = $region33
    $region32: #{tpu_custom_call.1} parent=1 // pred_region
      _
    $region33: #{tpu_custom_call.1} parent=1 // pred_fallthru
      _
    // Predicated region
    $region34: #{tpu_custom_call.1} parent=1 // pred_check
      _
    $region35: #{tpu_custom_call.1} parent=1 // pred_check_branch
      %73 = sbr.rel (0) target = $region37
    $region36: #{tpu_custom_call.1} parent=1 // pred_region
      %74 = dma.done [#allocation4], 128
    $region37: #{tpu_custom_call.1} parent=1 // pred_fallthru
      _
    // Predicated region
    $region38: #{tpu_custom_call.1} parent=1 // pred_check
      _
    $region39: #{tpu_custom_call.1} parent=1 // pred_check_branch
      %76 = sbr.rel (0) target = $region41
    $region40: #{tpu_custom_call.1} parent=1 // pred_region
      %77 = dma.done [#allocation7], 512
    $region41: #{tpu_custom_call.1} parent=1 // pred_fallthru
      _
    // Predicated region
    $region42: #{tpu_custom_call.1} parent=1 // pred_check
      _
    $region43: #{tpu_custom_call.1} parent=1 // pred_check_branch
      %79 = sbr.rel (0) target = $region45
    $region44: #{tpu_custom_call.1} parent=1 // pred_region
      %80 = dma.done [#allocation7], 12288
    $region45: #{tpu_custom_call.1} parent=1 // pred_fallthru
      _
    // Predicated region
    $region46: #{tpu_custom_call.1} parent=1 // pred_check
      _
    $region47: #{tpu_custom_call.1} parent=1 // pred_check_branch
      %82 = sbr.rel (0) target = $region49
    $region48: #{tpu_custom_call.1} parent=1 // pred_region
      %83 = dma.done [#allocation10], 3072
    $region49: #{tpu_custom_call.1} parent=1 // pred_fallthru
      _
    %s85 = sld [smem:[#allocation2]]
    %v86 = vld [vmem:[#allocation3] sm:$0xff]
    %v87 = vpack.c.bf16 %v86, %v86
    %v88 = vld [vmem:[#allocation6] sm:$0xff]
    %v89 = vld [vmem:[#allocation6 + $0x8] sm:$0xff]
    %v90 = vld [vmem:[#allocation6 + $0x10] sm:$0xff]
    %v91 = vld [vmem:[#allocation6 + $0x18] sm:$0xff]
    %v92 = vld [vmem:[%s3] sm:$0xf]
    %v94 = vlaneseq
    %v95 = vshrl.u32 %v94, 7
    %v96 = vsub.s32 0, %v95
    %v97 = vrot.slane %v92, %v96
    %v98 = vlaneseq
    %v99 = vshrl.u32 %v98, 7
    %v100 = vsub.s32 1, %v99
    %v101 = vrot.slane %v92, %v100
    %v102 = vlaneseq
    %v103 = vshrl.u32 %v102, 7
    %v104 = vsub.s32 2, %v103
    %v105 = vrot.slane %v92, %v104
    %v106 = vlaneseq
    %v107 = vshrl.u32 %v106, 7
    %v108 = vsub.s32 3, %v107
    %v109 = vrot.slane %v92, %v108
    %v118 = vunpack.c.l.b16 %v88
    %v119 = vunpack.c.h.b16 %v88
    %v120 = vunpack.c.l.b16 %v89
    %v121 = vunpack.c.h.b16 %v89
    %v122 = vunpack.c.l.b16 %v90
    %v123 = vunpack.c.h.b16 %v90
    %v124 = vunpack.c.l.b16 %v91
    %v125 = vunpack.c.h.b16 %v91
    %v126 = vpack.c.b16 %v122, %v118
    %v127 = vpack.c.b16 %v123, %v119
    %v128 = vpack.c.b16 %v124, %v120
    %v129 = vpack.c.b16 %v125, %v121
    %vm134 = vcmask 130048
    %v136 = vsel %vm134, %v87, 0
    %138 = vmatprep.subr.bf16.mxu0 %v127
    %139 = vmatpush1.bf16.msra.mxu0 %v126
    %140 = vmatprep.subr.bf16.mxu0 0
    %141 = vmatpush1.bf16.msra.mxu0 0
    %142 = vmatprep.subr.bf16.mxu0 0
    %143 = vmatpush1.bf16.msra.mxu0 0
    %144 = vmatprep.subr.bf16.mxu0 0
    %145 = vmatpush1.bf16.msra.mxu0 0
    %146 = vmatprep.subr.bf16.mxu0 0
    %147 = vmatpush1.bf16.msra.mxu0 0
    %148 = vmatprep.subr.bf16.mxu0 0
    %149 = vmatpush1.bf16.msra.mxu0 0
    %150 = vmatprep.subr.bf16.mxu0 0
    %151 = vmatpush1.bf16.msra.mxu0 0
    %152 = vmatprep.subr.bf16.mxu0 0
    %153 = vmatpush1.bf16.msra.mxu0 0
    %154 = vmatprep.subr.bf16.mxu0 0
    %155 = vmatpush1.bf16.msra.mxu0 0
    %156 = vmatprep.subr.bf16.mxu0 0
    %157 = vmatpush1.bf16.msra.mxu0 0
    %158 = vmatprep.subr.bf16.mxu0 0
    %159 = vmatpush1.bf16.msra.mxu0 0
    %160 = vmatprep.subr.bf16.mxu0 0
    %161 = vmatpush1.bf16.msra.mxu0 0
    %162 = vmatprep.subr.bf16.mxu0 0
    %163 = vmatpush1.bf16.msra.mxu0 0
    %164 = vmatprep.subr.bf16.mxu0 0
    %165 = vmatpush1.bf16.msra.mxu0 0
    %166 = vmatprep.subr.bf16.mxu0 0
    %167 = vmatpush1.bf16.msra.mxu0 0
    %168 = vmatprep.subr.bf16.mxu0 0
    %169 = vmatpush1.bf16.msra.mxu0 0
    %170 = vmatprep.mubr.bf16.mxu0 0
    %171 = vmatmul.mubr.bf16.gmra.mrb[0].mxu0 %v136
    %v172 = vpop.f32.mrb[0].mxu0
    %v173 = vadd.f32 %v97, %v172
    %v174 = vpop.f32.mrb[0].mxu0
    %v175 = vadd.f32 %v101, %v174
    %v176 = vpop.f32.mrb[0].mxu0
    %v177 = vpop.f32.mrb[0].mxu0
    %178 = vdwg.mxu0
    %179 = vmatprep.subr.bf16.mxu0 %v129
    %180 = vmatpush1.bf16.msra.mxu0 %v128
    %181 = vmatprep.subr.bf16.mxu0 0
    %182 = vmatpush1.bf16.msra.mxu0 0
    %183 = vmatprep.subr.bf16.mxu0 0
    %184 = vmatpush1.bf16.msra.mxu0 0
    %185 = vmatprep.subr.bf16.mxu0 0
    %186 = vmatpush1.bf16.msra.mxu0 0
    %187 = vmatprep.subr.bf16.mxu0 0
    %188 = vmatpush1.bf16.msra.mxu0 0
    %189 = vmatprep.subr.bf16.mxu0 0
    %190 = vmatpush1.bf16.msra.mxu0 0
    %191 = vmatprep.subr.bf16.mxu0 0
    %192 = vmatpush1.bf16.msra.mxu0 0
    %193 = vmatprep.subr.bf16.mxu0 0
    %194 = vmatpush1.bf16.msra.mxu0 0
    %195 = vmatprep.subr.bf16.mxu0 0
    %196 = vmatpush1.bf16.msra.mxu0 0
    %197 = vmatprep.subr.bf16.mxu0 0
    %198 = vmatpush1.bf16.msra.mxu0 0
    %199 = vmatprep.subr.bf16.mxu0 0
    %200 = vmatpush1.bf16.msra.mxu0 0
    %201 = vmatprep.subr.bf16.mxu0 0
    %202 = vmatpush1.bf16.msra.mxu0 0
    %203 = vmatprep.subr.bf16.mxu0 0
    %204 = vmatpush1.bf16.msra.mxu0 0
    %205 = vmatprep.subr.bf16.mxu0 0
    %206 = vmatpush1.bf16.msra.mxu0 0
    %207 = vmatprep.subr.bf16.mxu0 0
    %208 = vmatpush1.bf16.msra.mxu0 0
    %209 = vmatprep.subr.bf16.mxu0 0
    %210 = vmatpush1.bf16.msra.mxu0 0
    %211 = vmatprep.mubr.bf16.mxu0 0
    %212 = vmatmul.mubr.bf16.gmra.mrb[0].mxu0 %v136
    %v213 = vpop.f32.mrb[0].mxu0
    %v214 = vadd.f32 %v105, %v213
    %v215 = vpop.f32.mrb[0].mxu0
    %v216 = vadd.f32 %v109, %v215
    %v217 = vpop.f32.mrb[0].mxu0
    %v218 = vpop.f32.mrb[0].mxu0
    %219 = vdwg.mxu0
    %v220 = vmax.f32 %v173, 0.0
    %v221 = vmax.f32 %v175, 0.0
    %v222 = vmax.f32 %v214, 0.0
    %v223 = vmax.f32 %v216, 0.0
    %v224 = vpack.c.bf16 %v220, %v220
    %v225 = vpack.c.bf16 %v221, %v221
    %v226 = vpack.c.bf16 %v222, %v222
    %v227 = vpack.c.bf16 %v223, %v223
    %v228 = vld [vmem:[#allocation8] sm:$0xff]
    %v229 = vld [vmem:[#allocation8 + $0x8] sm:$0xf]
    %v230 = vld [vmem:[#allocation8 + $0xc] sm:$0xff]
    %v231 = vld [vmem:[#allocation8 + $0x14] sm:$0xf]
    %v232 = vld [vmem:[#allocation8 + $0x18] sm:$0xff]
    %v233 = vld [vmem:[#allocation8 + $0x20] sm:$0xf]
    %v234 = vld [vmem:[#allocation8 + $0x24] sm:$0xff]
    %v235 = vld [vmem:[#allocation8 + $0x2c] sm:$0xf]
    %v236 = vld [vmem:[#allocation8 + $0x30] sm:$0xff]
    %v237 = vld [vmem:[#allocation8 + $0x38] sm:$0xf]
    %v238 = vld [vmem:[#allocation8 + $0x3c] sm:$0xff]
    %v239 = vld [vmem:[#allocation8 + $0x44] sm:$0xf]
    %v240 = vld [vmem:[#allocation8 + $0x48] sm:$0xff]
    %v241 = vld [vmem:[#allocation8 + $0x50] sm:$0xf]
    %v242 = vld [vmem:[#allocation8 + $0x54] sm:$0xff]
    %v243 = vld [vmem:[#allocation8 + $0x5c] sm:$0xf]
    %v244 = vld [vmem:[#allocation8 + $0x60] sm:$0xff]
    %v245 = vld [vmem:[#allocation8 + $0x68] sm:$0xf]
    %v246 = vld [vmem:[#allocation8 + $0x6c] sm:$0xff]
    %v247 = vld [vmem:[#allocation8 + $0x74] sm:$0xf]
    %v248 = vld [vmem:[#allocation8 + $0x78] sm:$0xff]
    %v249 = vld [vmem:[#allocation8 + $0x80] sm:$0xf]
    %v250 = vld [vmem:[#allocation8 + $0x84] sm:$0xff]
    %v251 = vld [vmem:[#allocation8 + $0x8c] sm:$0xf]
    %v252 = vld [vmem:[#allocation8 + $0x90] sm:$0xff]
    %v253 = vld [vmem:[#allocation8 + $0x98] sm:$0xf]
    %v254 = vld [vmem:[#allocation8 + $0x9c] sm:$0xff]
    %v255 = vld [vmem:[#allocation8 + $0xa4] sm:$0xf]
    %v256 = vld [vmem:[#allocation8 + $0xa8] sm:$0xff]
    %v257 = vld [vmem:[#allocation8 + $0xb0] sm:$0xf]
    %v258 = vld [vmem:[#allocation8 + $0xb4] sm:$0xff]
    %v259 = vld [vmem:[#allocation8 + $0xbc] sm:$0xf]
    %v260 = vld [vmem:[#allocation8 + $0xc0] sm:$0xff]
    %v261 = vld [vmem:[#allocation8 + $0xc8] sm:$0xf]
    %v262 = vld [vmem:[#allocation8 + $0xcc] sm:$0xff]
    %v263 = vld [vmem:[#allocation8 + $0xd4] sm:$0xf]
    %v264 = vld [vmem:[#allocation8 + $0xd8] sm:$0xff]
    %v265 = vld [vmem:[#allocation8 + $0xe0] sm:$0xf]
    %v266 = vld [vmem:[#allocation8 + $0xe4] sm:$0xff]
    %v267 = vld [vmem:[#allocation8 + $0xec] sm:$0xf]
    %v268 = vld [vmem:[#allocation8 + $0xf0] sm:$0xff]
    %v269 = vld [vmem:[#allocation8 + $0xf8] sm:$0xf]
    %v270 = vld [vmem:[#allocation8 + $0xfc] sm:$0xff]
    %v271 = vld [vmem:[#allocation8 + $0x104] sm:$0xf]
    %v272 = vld [vmem:[#allocation8 + $0x108] sm:$0xff]
    %v273 = vld [vmem:[#allocation8 + $0x110] sm:$0xf]
    %v274 = vld [vmem:[#allocation8 + $0x114] sm:$0xff]
    %v275 = vld [vmem:[#allocation8 + $0x11c] sm:$0xf]
    %v276 = vld [vmem:[#allocation8 + $0x120] sm:$0xff]
    %v277 = vld [vmem:[#allocation8 + $0x128] sm:$0xf]
    %v278 = vld [vmem:[#allocation8 + $0x12c] sm:$0xff]
    %v279 = vld [vmem:[#allocation8 + $0x134] sm:$0xf]
    %v280 = vld [vmem:[#allocation8 + $0x138] sm:$0xff]
    %v281 = vld [vmem:[#allocation8 + $0x140] sm:$0xf]
    %v282 = vld [vmem:[#allocation8 + $0x144] sm:$0xff]
    %v283 = vld [vmem:[#allocation8 + $0x14c] sm:$0xf]
    %v284 = vld [vmem:[#allocation8 + $0x150] sm:$0xff]
    %v285 = vld [vmem:[#allocation8 + $0x158] sm:$0xf]
    %v286 = vld [vmem:[#allocation8 + $0x15c] sm:$0xff]
    %v287 = vld [vmem:[#allocation8 + $0x164] sm:$0xf]
    %v288 = vld [vmem:[#allocation8 + $0x168] sm:$0xff]
    %v289 = vld [vmem:[#allocation8 + $0x170] sm:$0xf]
    %v290 = vld [vmem:[#allocation8 + $0x174] sm:$0xff]
    %v291 = vld [vmem:[#allocation8 + $0x17c] sm:$0xf]
    %v292 = vld [vmem:[#allocation8 + $0x180] sm:$0xff]
    %v293 = vld [vmem:[#allocation8 + $0x188] sm:$0xf]
    %v294 = vld [vmem:[#allocation8 + $0x18c] sm:$0xff]
    %v295 = vld [vmem:[#allocation8 + $0x194] sm:$0xf]
    %v296 = vld [vmem:[#allocation8 + $0x198] sm:$0xff]
    %v297 = vld [vmem:[#allocation8 + $0x1a0] sm:$0xf]
    %v298 = vld [vmem:[#allocation8 + $0x1a4] sm:$0xff]
    %v299 = vld [vmem:[#allocation8 + $0x1ac] sm:$0xf]
    %v300 = vld [vmem:[#allocation8 + $0x1b0] sm:$0xff]
    %v301 = vld [vmem:[#allocation8 + $0x1b8] sm:$0xf]
    %v302 = vld [vmem:[#allocation8 + $0x1bc] sm:$0xff]
    %v303 = vld [vmem:[#allocation8 + $0x1c4] sm:$0xf]
    %v304 = vld [vmem:[#allocation8 + $0x1c8] sm:$0xff]
    %v305 = vld [vmem:[#allocation8 + $0x1d0] sm:$0xf]
    %v306 = vld [vmem:[#allocation8 + $0x1d4] sm:$0xff]
    %v307 = vld [vmem:[#allocation8 + $0x1dc] sm:$0xf]
    %v308 = vld [vmem:[#allocation8 + $0x1e0] sm:$0xff]
    %v309 = vld [vmem:[#allocation8 + $0x1e8] sm:$0xf]
    %v310 = vld [vmem:[#allocation8 + $0x1ec] sm:$0xff]
    %v311 = vld [vmem:[#allocation8 + $0x1f4] sm:$0xf]
    %v312 = vld [vmem:[#allocation8 + $0x1f8] sm:$0xff]
    %v313 = vld [vmem:[#allocation8 + $0x200] sm:$0xf]
    %v314 = vld [vmem:[#allocation8 + $0x204] sm:$0xff]
    %v315 = vld [vmem:[#allocation8 + $0x20c] sm:$0xf]
    %v316 = vld [vmem:[#allocation8 + $0x210] sm:$0xff]
    %v317 = vld [vmem:[#allocation8 + $0x218] sm:$0xf]
    %v318 = vld [vmem:[#allocation8 + $0x21c] sm:$0xff]
    %v319 = vld [vmem:[#allocation8 + $0x224] sm:$0xf]
    %v320 = vld [vmem:[#allocation8 + $0x228] sm:$0xff]
    %v321 = vld [vmem:[#allocation8 + $0x230] sm:$0xf]
    %v322 = vld [vmem:[#allocation8 + $0x234] sm:$0xff]
    %v323 = vld [vmem:[#allocation8 + $0x23c] sm:$0xf]
    %v324 = vld [vmem:[#allocation8 + $0x240] sm:$0xff]
    %v325 = vld [vmem:[#allocation8 + $0x248] sm:$0xf]
    %v326 = vld [vmem:[#allocation8 + $0x24c] sm:$0xff]
    %v327 = vld [vmem:[#allocation8 + $0x254] sm:$0xf]
    %v328 = vld [vmem:[#allocation8 + $0x258] sm:$0xff]
    %v329 = vld [vmem:[#allocation8 + $0x260] sm:$0xf]
    %v330 = vld [vmem:[#allocation8 + $0x264] sm:$0xff]
    %v331 = vld [vmem:[#allocation8 + $0x26c] sm:$0xf]
    %v332 = vld [vmem:[#allocation8 + $0x270] sm:$0xff]
    %v333 = vld [vmem:[#allocation8 + $0x278] sm:$0xf]
    %v334 = vld [vmem:[#allocation8 + $0x27c] sm:$0xff]
    %v335 = vld [vmem:[#allocation8 + $0x284] sm:$0xf]
    %v336 = vld [vmem:[#allocation8 + $0x288] sm:$0xff]
    %v337 = vld [vmem:[#allocation8 + $0x290] sm:$0xf]
    %v338 = vld [vmem:[#allocation8 + $0x294] sm:$0xff]
    %v339 = vld [vmem:[#allocation8 + $0x29c] sm:$0xf]
    %v340 = vld [vmem:[#allocation8 + $0x2a0] sm:$0xff]
    %v341 = vld [vmem:[#allocation8 + $0x2a8] sm:$0xf]
    %v342 = vld [vmem:[#allocation8 + $0x2ac] sm:$0xff]
    %v343 = vld [vmem:[#allocation8 + $0x2b4] sm:$0xf]
    %v344 = vld [vmem:[#allocation8 + $0x2b8] sm:$0xff]
    %v345 = vld [vmem:[#allocation8 + $0x2c0] sm:$0xf]
    %v346 = vld [vmem:[#allocation8 + $0x2c4] sm:$0xff]
    %v347 = vld [vmem:[#allocation8 + $0x2cc] sm:$0xf]
    %v348 = vld [vmem:[#allocation8 + $0x2d0] sm:$0xff]
    %v349 = vld [vmem:[#allocation8 + $0x2d8] sm:$0xf]
    %v350 = vld [vmem:[#allocation8 + $0x2dc] sm:$0xff]
    %v351 = vld [vmem:[#allocation8 + $0x2e4] sm:$0xf]
    %v352 = vld [vmem:[#allocation8 + $0x2e8] sm:$0xff]
    %v353 = vld [vmem:[#allocation8 + $0x2f0] sm:$0xf]
    %v354 = vld [vmem:[#allocation8 + $0x2f4] sm:$0xff]
    %v355 = vld [vmem:[#allocation8 + $0x2fc] sm:$0xf]
    %v356 = vld [vmem:[%s5] sm:$0x7]
    %v358 = vlaneseq
    %v359 = vshrl.u32 %v358, 7
    %v360 = vsub.s32 0, %v359
    %v361 = vrot.slane %v356, %v360
    %v362 = vlaneseq
    %v363 = vshrl.u32 %v362, 7
    %v364 = vsub.s32 1, %v363
    %v365 = vrot.slane %v356, %v364
    %v366 = vlaneseq
    %v367 = vshrl.u32 %v366, 7
    %v368 = vsub.s32 2, %v367
    %v369 = vrot.slane %v356, %v368
    %v501 = vunpack.c.l.b16 %v228
    %v502 = vunpack.c.h.b16 %v228
    %v503 = vunpack.c.l.b16 %v229
    %v504 = vunpack.c.l.b16 %v230
    %v505 = vunpack.c.h.b16 %v230
    %v506 = vunpack.c.l.b16 %v231
    %v507 = vunpack.c.l.b16 %v232
    %v508 = vunpack.c.h.b16 %v232
    %v509 = vunpack.c.l.b16 %v233
    %v510 = vunpack.c.l.b16 %v234
    %v511 = vunpack.c.h.b16 %v234
    %v512 = vunpack.c.l.b16 %v235
    %v513 = vunpack.c.l.b16 %v236
    %v514 = vunpack.c.h.b16 %v236
    %v515 = vunpack.c.l.b16 %v237
    %v516 = vunpack.c.l.b16 %v238
    %v517 = vunpack.c.h.b16 %v238
    %v518 = vunpack.c.l.b16 %v239
    %v519 = vunpack.c.l.b16 %v240
    %v520 = vunpack.c.h.b16 %v240
    %v521 = vunpack.c.l.b16 %v241
    %v522 = vunpack.c.l.b16 %v242
    %v523 = vunpack.c.h.b16 %v242
    %v524 = vunpack.c.l.b16 %v243
    %v525 = vunpack.c.l.b16 %v244
    %v526 = vunpack.c.h.b16 %v244
    %v527 = vunpack.c.l.b16 %v245
    %v528 = vunpack.c.l.b16 %v246
    %v529 = vunpack.c.h.b16 %v246
    %v530 = vunpack.c.l.b16 %v247
    %v531 = vunpack.c.l.b16 %v248
    %v532 = vunpack.c.h.b16 %v248
    %v533 = vunpack.c.l.b16 %v249
    %v534 = vunpack.c.l.b16 %v250
    %v535 = vunpack.c.h.b16 %v250
    %v536 = vunpack.c.l.b16 %v251
    %v537 = vunpack.c.l.b16 %v252
    %v538 = vunpack.c.h.b16 %v252
    %v539 = vunpack.c.l.b16 %v253
    %v540 = vunpack.c.l.b16 %v254
    %v541 = vunpack.c.h.b16 %v254
    %v542 = vunpack.c.l.b16 %v255
    %v543 = vunpack.c.l.b16 %v256
    %v544 = vunpack.c.h.b16 %v256
    %v545 = vunpack.c.l.b16 %v257
    %v546 = vunpack.c.l.b16 %v258
    %v547 = vunpack.c.h.b16 %v258
    %v548 = vunpack.c.l.b16 %v259
    %v549 = vunpack.c.l.b16 %v260
    %v550 = vunpack.c.h.b16 %v260
    %v551 = vunpack.c.l.b16 %v261
    %v552 = vunpack.c.l.b16 %v262
    %v553 = vunpack.c.h.b16 %v262
    %v554 = vunpack.c.l.b16 %v263
    %v555 = vunpack.c.l.b16 %v264
    %v556 = vunpack.c.h.b16 %v264
    %v557 = vunpack.c.l.b16 %v265
    %v558 = vunpack.c.l.b16 %v266
    %v559 = vunpack.c.h.b16 %v266
    %v560 = vunpack.c.l.b16 %v267
    %v561 = vunpack.c.l.b16 %v268
    %v562 = vunpack.c.h.b16 %v268
    %v563 = vunpack.c.l.b16 %v269
    %v564 = vunpack.c.l.b16 %v270
    %v565 = vunpack.c.h.b16 %v270
    %v566 = vunpack.c.l.b16 %v271
    %v567 = vunpack.c.l.b16 %v272
    %v568 = vunpack.c.h.b16 %v272
    %v569 = vunpack.c.l.b16 %v273
    %v570 = vunpack.c.l.b16 %v274
    %v571 = vunpack.c.h.b16 %v274
    %v572 = vunpack.c.l.b16 %v275
    %v573 = vunpack.c.l.b16 %v276
    %v574 = vunpack.c.h.b16 %v276
    %v575 = vunpack.c.l.b16 %v277
    %v576 = vunpack.c.l.b16 %v278
    %v577 = vunpack.c.h.b16 %v278
    %v578 = vunpack.c.l.b16 %v279
    %v579 = vunpack.c.l.b16 %v280
    %v580 = vunpack.c.h.b16 %v280
    %v581 = vunpack.c.l.b16 %v281
    %v582 = vunpack.c.l.b16 %v282
    %v583 = vunpack.c.h.b16 %v282
    %v584 = vunpack.c.l.b16 %v283
    %v585 = vunpack.c.l.b16 %v284
    %v586 = vunpack.c.h.b16 %v284
    %v587 = vunpack.c.l.b16 %v285
    %v588 = vunpack.c.l.b16 %v286
    %v589 = vunpack.c.h.b16 %v286
    %v590 = vunpack.c.l.b16 %v287
    %v591 = vunpack.c.l.b16 %v288
    %v592 = vunpack.c.h.b16 %v288
    %v593 = vunpack.c.l.b16 %v289
    %v594 = vunpack.c.l.b16 %v290
    %v595 = vunpack.c.h.b16 %v290
    %v596 = vunpack.c.l.b16 %v291
    %v597 = vunpack.c.l.b16 %v292
    %v598 = vunpack.c.h.b16 %v292
    %v599 = vunpack.c.l.b16 %v293
    %v600 = vunpack.c.l.b16 %v294
    %v601 = vunpack.c.h.b16 %v294
    %v602 = vunpack.c.l.b16 %v295
    %v603 = vunpack.c.l.b16 %v296
    %v604 = vunpack.c.h.b16 %v296
    %v605 = vunpack.c.l.b16 %v297
    %v606 = vunpack.c.l.b16 %v298
    %v607 = vunpack.c.h.b16 %v298
    %v608 = vunpack.c.l.b16 %v299
    %v609 = vunpack.c.l.b16 %v300
    %v610 = vunpack.c.h.b16 %v300
    %v611 = vunpack.c.l.b16 %v301
    %v612 = vunpack.c.l.b16 %v302
    %v613 = vunpack.c.h.b16 %v302
    %v614 = vunpack.c.l.b16 %v303
    %v615 = vunpack.c.l.b16 %v304
    %v616 = vunpack.c.h.b16 %v304
    %v617 = vunpack.c.l.b16 %v305
    %v618 = vunpack.c.l.b16 %v306
    %v619 = vunpack.c.h.b16 %v306
    %v620 = vunpack.c.l.b16 %v307
    %v621 = vunpack.c.l.b16 %v308
    %v622 = vunpack.c.h.b16 %v308
    %v623 = vunpack.c.l.b16 %v309
    %v624 = vunpack.c.l.b16 %v310
    %v625 = vunpack.c.h.b16 %v310
    %v626 = vunpack.c.l.b16 %v311
    %v627 = vunpack.c.l.b16 %v312
    %v628 = vunpack.c.h.b16 %v312
    %v629 = vunpack.c.l.b16 %v313
    %v630 = vunpack.c.l.b16 %v314
    %v631 = vunpack.c.h.b16 %v314
    %v632 = vunpack.c.l.b16 %v315
    %v633 = vunpack.c.l.b16 %v316
    %v634 = vunpack.c.h.b16 %v316
    %v635 = vunpack.c.l.b16 %v317
    %v636 = vunpack.c.l.b16 %v318
    %v637 = vunpack.c.h.b16 %v318
    %v638 = vunpack.c.l.b16 %v319
    %v639 = vunpack.c.l.b16 %v320
    %v640 = vunpack.c.h.b16 %v320
    %v641 = vunpack.c.l.b16 %v321
    %v642 = vunpack.c.l.b16 %v322
    %v643 = vunpack.c.h.b16 %v322
    %v644 = vunpack.c.l.b16 %v323
    %v645 = vunpack.c.l.b16 %v324
    %v646 = vunpack.c.h.b16 %v324
    %v647 = vunpack.c.l.b16 %v325
    %v648 = vunpack.c.l.b16 %v326
    %v649 = vunpack.c.h.b16 %v326
    %v650 = vunpack.c.l.b16 %v327
    %v651 = vunpack.c.l.b16 %v328
    %v652 = vunpack.c.h.b16 %v328
    %v653 = vunpack.c.l.b16 %v329
    %v654 = vunpack.c.l.b16 %v330
    %v655 = vunpack.c.h.b16 %v330
    %v656 = vunpack.c.l.b16 %v331
    %v657 = vunpack.c.l.b16 %v332
    %v658 = vunpack.c.h.b16 %v332
    %v659 = vunpack.c.l.b16 %v333
    %v660 = vunpack.c.l.b16 %v334
    %v661 = vunpack.c.h.b16 %v334
    %v662 = vunpack.c.l.b16 %v335
    %v663 = vunpack.c.l.b16 %v336
    %v664 = vunpack.c.h.b16 %v336
    %v665 = vunpack.c.l.b16 %v337
    %v666 = vunpack.c.l.b16 %v338
    %v667 = vunpack.c.h.b16 %v338
    %v668 = vunpack.c.l.b16 %v339
    %v669 = vunpack.c.l.b16 %v340
    %v670 = vunpack.c.h.b16 %v340
    %v671 = vunpack.c.l.b16 %v341
    %v672 = vunpack.c.l.b16 %v342
    %v673 = vunpack.c.h.b16 %v342
    %v674 = vunpack.c.l.b16 %v343
    %v675 = vunpack.c.l.b16 %v344
    %v676 = vunpack.c.h.b16 %v344
    %v677 = vunpack.c.l.b16 %v345
    %v678 = vunpack.c.l.b16 %v346
    %v679 = vunpack.c.h.b16 %v346
    %v680 = vunpack.c.l.b16 %v347
    %v681 = vunpack.c.l.b16 %v348
    %v682 = vunpack.c.h.b16 %v348
    %v683 = vunpack.c.l.b16 %v349
    %v684 = vunpack.c.l.b16 %v350
    %v685 = vunpack.c.h.b16 %v350
    %v686 = vunpack.c.l.b16 %v351
    %v687 = vunpack.c.l.b16 %v352
    %v688 = vunpack.c.h.b16 %v352
    %v689 = vunpack.c.l.b16 %v353
    %v690 = vunpack.c.l.b16 %v354
    %v691 = vunpack.c.h.b16 %v354
    %v692 = vunpack.c.l.b16 %v355
    %v693 = vpack.c.b16 %v504, %v501
    %v694 = vpack.c.b16 %v505, %v502
    %v695 = vpack.c.b16 %v506, %v503
    %v696 = vpack.c.b16 %v510, %v507
    %v697 = vpack.c.b16 %v511, %v508
    %v698 = vpack.c.b16 %v512, %v509
    %v699 = vpack.c.b16 %v516, %v513
    %v700 = vpack.c.b16 %v517, %v514
    %v701 = vpack.c.b16 %v518, %v515
    %v702 = vpack.c.b16 %v522, %v519
    %v703 = vpack.c.b16 %v523, %v520
    %v704 = vpack.c.b16 %v524, %v521
    %v705 = vpack.c.b16 %v528, %v525
    %v706 = vpack.c.b16 %v529, %v526
    %v707 = vpack.c.b16 %v530, %v527
    %v708 = vpack.c.b16 %v534, %v531
    %v709 = vpack.c.b16 %v535, %v532
    %v710 = vpack.c.b16 %v536, %v533
    %v711 = vpack.c.b16 %v540, %v537
    %v712 = vpack.c.b16 %v541, %v538
    %v713 = vpack.c.b16 %v542, %v539
    %v714 = vpack.c.b16 %v546, %v543
    %v715 = vpack.c.b16 %v547, %v544
    %v716 = vpack.c.b16 %v548, %v545
    %v717 = vpack.c.b16 %v552, %v549
    %v718 = vpack.c.b16 %v553, %v550
    %v719 = vpack.c.b16 %v554, %v551
    %v720 = vpack.c.b16 %v558, %v555
    %v721 = vpack.c.b16 %v559, %v556
    %v722 = vpack.c.b16 %v560, %v557
    %v723 = vpack.c.b16 %v564, %v561
    %v724 = vpack.c.b16 %v565, %v562
    %v725 = vpack.c.b16 %v566, %v563
    %v726 = vpack.c.b16 %v570, %v567
    %v727 = vpack.c.b16 %v571, %v568
    %v728 = vpack.c.b16 %v572, %v569
    %v729 = vpack.c.b16 %v576, %v573
    %v730 = vpack.c.b16 %v577, %v574
    %v731 = vpack.c.b16 %v578, %v575
    %v732 = vpack.c.b16 %v582, %v579
    %v733 = vpack.c.b16 %v583, %v580
    %v734 = vpack.c.b16 %v584, %v581
    %v735 = vpack.c.b16 %v588, %v585
    %v736 = vpack.c.b16 %v589, %v586
    %v737 = vpack.c.b16 %v590, %v587
    %v738 = vpack.c.b16 %v594, %v591
    %v739 = vpack.c.b16 %v595, %v592
    %v740 = vpack.c.b16 %v596, %v593
    %v741 = vpack.c.b16 %v600, %v597
    %v742 = vpack.c.b16 %v601, %v598
    %v743 = vpack.c.b16 %v602, %v599
    %v744 = vpack.c.b16 %v606, %v603
    %v745 = vpack.c.b16 %v607, %v604
    %v746 = vpack.c.b16 %v608, %v605
    %v747 = vpack.c.b16 %v612, %v609
    %v748 = vpack.c.b16 %v613, %v610
    %v749 = vpack.c.b16 %v614, %v611
    %v750 = vpack.c.b16 %v618, %v615
    %v751 = vpack.c.b16 %v619, %v616
    %v752 = vpack.c.b16 %v620, %v617
    %v753 = vpack.c.b16 %v624, %v621
    %v754 = vpack.c.b16 %v625, %v622
    %v755 = vpack.c.b16 %v626, %v623
    %v756 = vpack.c.b16 %v630, %v627
    %v757 = vpack.c.b16 %v631, %v628
    %v758 = vpack.c.b16 %v632, %v629
    %v759 = vpack.c.b16 %v636, %v633
    %v760 = vpack.c.b16 %v637, %v634
    %v761 = vpack.c.b16 %v638, %v635
    %v762 = vpack.c.b16 %v642, %v639
    %v763 = vpack.c.b16 %v643, %v640
    %v764 = vpack.c.b16 %v644, %v641
    %v765 = vpack.c.b16 %v648, %v645
    %v766 = vpack.c.b16 %v649, %v646
    %v767 = vpack.c.b16 %v650, %v647
    %v768 = vpack.c.b16 %v654, %v651
    %v769 = vpack.c.b16 %v655, %v652
    %v770 = vpack.c.b16 %v656, %v653
    %v771 = vpack.c.b16 %v660, %v657
    %v772 = vpack.c.b16 %v661, %v658
    %v773 = vpack.c.b16 %v662, %v659
    %v774 = vpack.c.b16 %v666, %v663
    %v775 = vpack.c.b16 %v667, %v664
    %v776 = vpack.c.b16 %v668, %v665
    %v777 = vpack.c.b16 %v672, %v669
    %v778 = vpack.c.b16 %v673, %v670
    %v779 = vpack.c.b16 %v674, %v671
    %v780 = vpack.c.b16 %v678, %v675
    %v781 = vpack.c.b16 %v679, %v676
    %v782 = vpack.c.b16 %v680, %v677
    %v783 = vpack.c.b16 %v684, %v681
    %v784 = vpack.c.b16 %v685, %v682
    %v785 = vpack.c.b16 %v686, %v683
    %v786 = vpack.c.b16 %v690, %v687
    %v787 = vpack.c.b16 %v691, %v688
    %v788 = vpack.c.b16 %v692, %v689
    %885 = vmatprep.subr.bf16.mxu0 %v694
    %886 = vmatpush1.bf16.msra.mxu0 %v693
    %887 = vmatprep.subr.bf16.mxu0 %v697
    %888 = vmatpush1.bf16.msra.mxu0 %v696
    %889 = vmatprep.subr.bf16.mxu0 %v700
    %890 = vmatpush1.bf16.msra.mxu0 %v699
    %891 = vmatprep.subr.bf16.mxu0 %v703
    %892 = vmatpush1.bf16.msra.mxu0 %v702
    %893 = vmatprep.subr.bf16.mxu0 %v706
    %894 = vmatpush1.bf16.msra.mxu0 %v705
    %895 = vmatprep.subr.bf16.mxu0 %v709
    %896 = vmatpush1.bf16.msra.mxu0 %v708
    %897 = vmatprep.subr.bf16.mxu0 %v712
    %898 = vmatpush1.bf16.msra.mxu0 %v711
    %899 = vmatprep.subr.bf16.mxu0 %v715
    %900 = vmatpush1.bf16.msra.mxu0 %v714
    %901 = vmatprep.subr.bf16.mxu0 %v718
    %902 = vmatpush1.bf16.msra.mxu0 %v717
    %903 = vmatprep.subr.bf16.mxu0 %v721
    %904 = vmatpush1.bf16.msra.mxu0 %v720
    %905 = vmatprep.subr.bf16.mxu0 %v724
    %906 = vmatpush1.bf16.msra.mxu0 %v723
    %907 = vmatprep.subr.bf16.mxu0 %v727
    %908 = vmatpush1.bf16.msra.mxu0 %v726
    %909 = vmatprep.subr.bf16.mxu0 %v730
    %910 = vmatpush1.bf16.msra.mxu0 %v729
    %911 = vmatprep.subr.bf16.mxu0 %v733
    %912 = vmatpush1.bf16.msra.mxu0 %v732
    %913 = vmatprep.subr.bf16.mxu0 %v736
    %914 = vmatpush1.bf16.msra.mxu0 %v735
    %915 = vmatprep.subr.bf16.mxu0 %v739
    %916 = vmatpush1.bf16.msra.mxu0 %v738
    %917 = vmatprep.mubr.bf16.mxu0 %v225
    %918 = vmatmul.mubr.bf16.gmra.mrb[0].mxu0 %v224
    %v919 = vpop.f32.mrb[0].mxu0
    %v920 = vadd.f32 %v361, %v919
    %v921 = vpop.f32.mrb[0].mxu0
    %v922 = vadd.f32 %v365, %v921
    %v923 = vpop.f32.mrb[0].mxu0
    %v924 = vpop.f32.mrb[0].mxu0
    %925 = vdwg.mxu0
    %926 = vmatprep.subr.bf16.mxu0 %v742
    %927 = vmatpush1.bf16.msra.mxu0 %v741
    %928 = vmatprep.subr.bf16.mxu0 %v745
    %929 = vmatpush1.bf16.msra.mxu0 %v744
    %930 = vmatprep.subr.bf16.mxu0 %v748
    %931 = vmatpush1.bf16.msra.mxu0 %v747
    %932 = vmatprep.subr.bf16.mxu0 %v751
    %933 = vmatpush1.bf16.msra.mxu0 %v750
    %934 = vmatprep.subr.bf16.mxu0 %v754
    %935 = vmatpush1.bf16.msra.mxu0 %v753
    %936 = vmatprep.subr.bf16.mxu0 %v757
    %937 = vmatpush1.bf16.msra.mxu0 %v756
    %938 = vmatprep.subr.bf16.mxu0 %v760
    %939 = vmatpush1.bf16.msra.mxu0 %v759
    %940 = vmatprep.subr.bf16.mxu0 %v763
    %941 = vmatpush1.bf16.msra.mxu0 %v762
    %942 = vmatprep.subr.bf16.mxu0 %v766
    %943 = vmatpush1.bf16.msra.mxu0 %v765
    %944 = vmatprep.subr.bf16.mxu0 %v769
    %945 = vmatpush1.bf16.msra.mxu0 %v768
    %946 = vmatprep.subr.bf16.mxu0 %v772
    %947 = vmatpush1.bf16.msra.mxu0 %v771
    %948 = vmatprep.subr.bf16.mxu0 %v775
    %949 = vmatpush1.bf16.msra.mxu0 %v774
    %950 = vmatprep.subr.bf16.mxu0 %v778
    %951 = vmatpush1.bf16.msra.mxu0 %v777
    %952 = vmatprep.subr.bf16.mxu0 %v781
    %953 = vmatpush1.bf16.msra.mxu0 %v780
    %954 = vmatprep.subr.bf16.mxu0 %v784
    %955 = vmatpush1.bf16.msra.mxu0 %v783
    %956 = vmatprep.subr.bf16.mxu0 %v787
    %957 = vmatpush1.bf16.msra.mxu0 %v786
    %958 = vmatprep.mubr.bf16.mxu0 %v227
    %959 = vmatmul.mubr.bf16.gmra.mrb[0].mxu0 %v226
    %v960 = vpop.f32.mrb[0].mxu0
    %v961 = vadd.f32 %v920, %v960
    %v962 = vpop.f32.mrb[0].mxu0
    %v963 = vadd.f32 %v922, %v962
    %v964 = vpop.f32.mrb[0].mxu0
    %v965 = vpop.f32.mrb[0].mxu0
    %966 = vdwg.mxu0
    %967 = vmatprep.subr.bf16.mxu0 0
    %968 = vmatpush1.bf16.msra.mxu0 %v695
    %969 = vmatprep.subr.bf16.mxu0 0
    %970 = vmatpush1.bf16.msra.mxu0 %v698
    %971 = vmatprep.subr.bf16.mxu0 0
    %972 = vmatpush1.bf16.msra.mxu0 %v701
    %973 = vmatprep.subr.bf16.mxu0 0
    %974 = vmatpush1.bf16.msra.mxu0 %v704
    %975 = vmatprep.subr.bf16.mxu0 0
    %976 = vmatpush1.bf16.msra.mxu0 %v707
    %977 = vmatprep.subr.bf16.mxu0 0
    %978 = vmatpush1.bf16.msra.mxu0 %v710
    %979 = vmatprep.subr.bf16.mxu0 0
    %980 = vmatpush1.bf16.msra.mxu0 %v713
    %981 = vmatprep.subr.bf16.mxu0 0
    %982 = vmatpush1.bf16.msra.mxu0 %v716
    %983 = vmatprep.subr.bf16.mxu0 0
    %984 = vmatpush1.bf16.msra.mxu0 %v719
    %985 = vmatprep.subr.bf16.mxu0 0
    %986 = vmatpush1.bf16.msra.mxu0 %v722
    %987 = vmatprep.subr.bf16.mxu0 0
    %988 = vmatpush1.bf16.msra.mxu0 %v725
    %989 = vmatprep.subr.bf16.mxu0 0
    %990 = vmatpush1.bf16.msra.mxu0 %v728
    %991 = vmatprep.subr.bf16.mxu0 0
    %992 = vmatpush1.bf16.msra.mxu0 %v731
    %993 = vmatprep.subr.bf16.mxu0 0
    %994 = vmatpush1.bf16.msra.mxu0 %v734
    %995 = vmatprep.subr.bf16.mxu0 0
    %996 = vmatpush1.bf16.msra.mxu0 %v737
    %997 = vmatprep.subr.bf16.mxu0 0
    %998 = vmatpush1.bf16.msra.mxu0 %v740
    %999 = vmatprep.mubr.bf16.mxu0 %v225
    %1000 = vmatmul.mubr.bf16.gmra.mrb[0].mxu0 %v224
    %v1001 = vpop.f32.mrb[0].mxu0
    %v1002 = vadd.f32 %v369, %v1001
    %v1003 = vpop.f32.mrb[0].mxu0
    %v1004 = vpop.f32.mrb[0].mxu0
    %v1005 = vpop.f32.mrb[0].mxu0
    %1006 = vdwg.mxu0
    %1007 = vmatprep.subr.bf16.mxu0 0
    %1008 = vmatpush1.bf16.msra.mxu0 %v743
    %1009 = vmatprep.subr.bf16.mxu0 0
    %1010 = vmatpush1.bf16.msra.mxu0 %v746
    %1011 = vmatprep.subr.bf16.mxu0 0
    %1012 = vmatpush1.bf16.msra.mxu0 %v749
    %1013 = vmatprep.subr.bf16.mxu0 0
    %1014 = vmatpush1.bf16.msra.mxu0 %v752
    %1015 = vmatprep.subr.bf16.mxu0 0
    %1016 = vmatpush1.bf16.msra.mxu0 %v755
    %1017 = vmatprep.subr.bf16.mxu0 0
    %1018 = vmatpush1.bf16.msra.mxu0 %v758
    %1019 = vmatprep.subr.bf16.mxu0 0
    %1020 = vmatpush1.bf16.msra.mxu0 %v761
    %1021 = vmatprep.subr.bf16.mxu0 0
    %1022 = vmatpush1.bf16.msra.mxu0 %v764
    %1023 = vmatprep.subr.bf16.mxu0 0
    %1024 = vmatpush1.bf16.msra.mxu0 %v767
    %1025 = vmatprep.subr.bf16.mxu0 0
    %1026 = vmatpush1.bf16.msra.mxu0 %v770
    %1027 = vmatprep.subr.bf16.mxu0 0
    %1028 = vmatpush1.bf16.msra.mxu0 %v773
    %1029 = vmatprep.subr.bf16.mxu0 0
    %1030 = vmatpush1.bf16.msra.mxu0 %v776
    %1031 = vmatprep.subr.bf16.mxu0 0
    %1032 = vmatpush1.bf16.msra.mxu0 %v779
    %1033 = vmatprep.subr.bf16.mxu0 0
    %1034 = vmatpush1.bf16.msra.mxu0 %v782
    %1035 = vmatprep.subr.bf16.mxu0 0
    %1036 = vmatpush1.bf16.msra.mxu0 %v785
    %1037 = vmatprep.subr.bf16.mxu0 0
    %1038 = vmatpush1.bf16.msra.mxu0 %v788
    %1039 = vmatprep.mubr.bf16.mxu0 %v227
    %1040 = vmatmul.mubr.bf16.gmra.mrb[0].mxu0 %v226
    %v1041 = vpop.f32.mrb[0].mxu0
    %v1042 = vadd.f32 %v1002, %v1041
    %v1043 = vpop.f32.mrb[0].mxu0
    %v1044 = vpop.f32.mrb[0].mxu0
    %v1045 = vpop.f32.mrb[0].mxu0
    %1046 = vdwg.mxu0
    %v1047 = vmax.f32 %v961, 0.0
    %v1048 = vmax.f32 %v963, 0.0
    %v1049 = vmax.f32 %v1042, 0.0
    %v1050 = vpack.c.bf16 %v1047, %v1047
    %v1051 = vpack.c.bf16 %v1048, %v1048
    %v1052 = vpack.c.bf16 %v1049, %v1049
    %v1053 = vld [vmem:[#allocation9] sm:$0xf]
    %v1054 = vld [vmem:[#allocation9 + $0x4] sm:$0xf]
    %v1055 = vld [vmem:[#allocation9 + $0x8] sm:$0xf]
    %v1056 = vld [vmem:[#allocation9 + $0xc] sm:$0xf]
    %v1057 = vld [vmem:[#allocation9 + $0x10] sm:$0xf]
    %v1058 = vld [vmem:[#allocation9 + $0x14] sm:$0xf]
    %v1059 = vld [vmem:[#allocation9 + $0x18] sm:$0xf]
    %v1060 = vld [vmem:[#allocation9 + $0x1c] sm:$0xf]
    %v1061 = vld [vmem:[#allocation9 + $0x20] sm:$0xf]
    %v1062 = vld [vmem:[#allocation9 + $0x24] sm:$0xf]
    %v1063 = vld [vmem:[#allocation9 + $0x28] sm:$0xf]
    %v1064 = vld [vmem:[#allocation9 + $0x2c] sm:$0xf]
    %v1065 = vld [vmem:[#allocation9 + $0x30] sm:$0xf]
    %v1066 = vld [vmem:[#allocation9 + $0x34] sm:$0xf]
    %v1067 = vld [vmem:[#allocation9 + $0x38] sm:$0xf]
    %v1068 = vld [vmem:[#allocation9 + $0x3c] sm:$0xf]
    %v1069 = vld [vmem:[#allocation9 + $0x40] sm:$0xf]
    %v1070 = vld [vmem:[#allocation9 + $0x44] sm:$0xf]
    %v1071 = vld [vmem:[#allocation9 + $0x48] sm:$0xf]
    %v1072 = vld [vmem:[#allocation9 + $0x4c] sm:$0xf]
    %v1073 = vld [vmem:[#allocation9 + $0x50] sm:$0xf]
    %v1074 = vld [vmem:[#allocation9 + $0x54] sm:$0xf]
    %v1075 = vld [vmem:[#allocation9 + $0x58] sm:$0xf]
    %v1076 = vld [vmem:[#allocation9 + $0x5c] sm:$0xf]
    %v1077 = vld [vmem:[#allocation9 + $0x60] sm:$0xf]
    %v1078 = vld [vmem:[#allocation9 + $0x64] sm:$0xf]
    %v1079 = vld [vmem:[#allocation9 + $0x68] sm:$0xf]
    %v1080 = vld [vmem:[#allocation9 + $0x6c] sm:$0xf]
    %v1081 = vld [vmem:[#allocation9 + $0x70] sm:$0xf]
    %v1082 = vld [vmem:[#allocation9 + $0x74] sm:$0xf]
    %v1083 = vld [vmem:[#allocation9 + $0x78] sm:$0xf]
    %v1084 = vld [vmem:[#allocation9 + $0x7c] sm:$0xf]
    %v1085 = vld [vmem:[#allocation9 + $0x80] sm:$0xf]
    %v1086 = vld [vmem:[#allocation9 + $0x84] sm:$0xf]
    %v1087 = vld [vmem:[#allocation9 + $0x88] sm:$0xf]
    %v1088 = vld [vmem:[#allocation9 + $0x8c] sm:$0xf]
    %v1089 = vld [vmem:[#allocation9 + $0x90] sm:$0xf]
    %v1090 = vld [vmem:[#allocation9 + $0x94] sm:$0xf]
    %v1091 = vld [vmem:[#allocation9 + $0x98] sm:$0xf]
    %v1092 = vld [vmem:[#allocation9 + $0x9c] sm:$0xf]
    %v1093 = vld [vmem:[#allocation9 + $0xa0] sm:$0xf]
    %v1094 = vld [vmem:[#allocation9 + $0xa4] sm:$0xf]
    %v1095 = vld [vmem:[#allocation9 + $0xa8] sm:$0xf]
    %v1096 = vld [vmem:[#allocation9 + $0xac] sm:$0xf]
    %v1097 = vld [vmem:[#allocation9 + $0xb0] sm:$0xf]
    %v1098 = vld [vmem:[#allocation9 + $0xb4] sm:$0xf]
    %v1099 = vld [vmem:[#allocation9 + $0xb8] sm:$0xf]
    %v1100 = vld [vmem:[#allocation9 + $0xbc] sm:$0xf]
    %v1101 = vld [vmem:[%s7] sm:$0x1]
    %v1103 = vlaneseq
    %v1104 = vshrl.u32 %v1103, 7
    %v1105 = vsub.s32 0, %v1104
    %v1106 = vrot.slane %v1101, %v1105
    %v1156 = vunpack.c.l.b16 %v1053
    %v1157 = vunpack.c.l.b16 %v1054
    %v1158 = vunpack.c.l.b16 %v1055
    %v1159 = vunpack.c.l.b16 %v1056
    %v1160 = vunpack.c.l.b16 %v1057
    %v1161 = vunpack.c.l.b16 %v1058
    %v1162 = vunpack.c.l.b16 %v1059
    %v1163 = vunpack.c.l.b16 %v1060
    %v1164 = vunpack.c.l.b16 %v1061
    %v1165 = vunpack.c.l.b16 %v1062
    %v1166 = vunpack.c.l.b16 %v1063
    %v1167 = vunpack.c.l.b16 %v1064
    %v1168 = vunpack.c.l.b16 %v1065
    %v1169 = vunpack.c.l.b16 %v1066
    %v1170 = vunpack.c.l.b16 %v1067
    %v1171 = vunpack.c.l.b16 %v1068
    %v1172 = vunpack.c.l.b16 %v1069
    %v1173 = vunpack.c.l.b16 %v1070
    %v1174 = vunpack.c.l.b16 %v1071
    %v1175 = vunpack.c.l.b16 %v1072
    %v1176 = vunpack.c.l.b16 %v1073
    %v1177 = vunpack.c.l.b16 %v1074
    %v1178 = vunpack.c.l.b16 %v1075
    %v1179 = vunpack.c.l.b16 %v1076
    %v1180 = vunpack.c.l.b16 %v1077
    %v1181 = vunpack.c.l.b16 %v1078
    %v1182 = vunpack.c.l.b16 %v1079
    %v1183 = vunpack.c.l.b16 %v1080
    %v1184 = vunpack.c.l.b16 %v1081
    %v1185 = vunpack.c.l.b16 %v1082
    %v1186 = vunpack.c.l.b16 %v1083
    %v1187 = vunpack.c.l.b16 %v1084
    %v1188 = vunpack.c.l.b16 %v1085
    %v1189 = vunpack.c.l.b16 %v1086
    %v1190 = vunpack.c.l.b16 %v1087
    %v1191 = vunpack.c.l.b16 %v1088
    %v1192 = vunpack.c.l.b16 %v1089
    %v1193 = vunpack.c.l.b16 %v1090
    %v1194 = vunpack.c.l.b16 %v1091
    %v1195 = vunpack.c.l.b16 %v1092
    %v1196 = vunpack.c.l.b16 %v1093
    %v1197 = vunpack.c.l.b16 %v1094
    %v1198 = vunpack.c.l.b16 %v1095
    %v1199 = vunpack.c.l.b16 %v1096
    %v1200 = vunpack.c.l.b16 %v1097
    %v1201 = vunpack.c.l.b16 %v1098
    %v1202 = vunpack.c.l.b16 %v1099
    %v1203 = vunpack.c.l.b16 %v1100
    %v1204 = vpack.c.b16 %v1157, %v1156
    %v1205 = vpack.c.b16 %v1159, %v1158
    %v1206 = vpack.c.b16 %v1161, %v1160
    %v1207 = vpack.c.b16 %v1163, %v1162
    %v1208 = vpack.c.b16 %v1165, %v1164
    %v1209 = vpack.c.b16 %v1167, %v1166
    %v1210 = vpack.c.b16 %v1169, %v1168
    %v1211 = vpack.c.b16 %v1171, %v1170
    %v1212 = vpack.c.b16 %v1173, %v1172
    %v1213 = vpack.c.b16 %v1175, %v1174
    %v1214 = vpack.c.b16 %v1177, %v1176
    %v1215 = vpack.c.b16 %v1179, %v1178
    %v1216 = vpack.c.b16 %v1181, %v1180
    %v1217 = vpack.c.b16 %v1183, %v1182
    %v1218 = vpack.c.b16 %v1185, %v1184
    %v1219 = vpack.c.b16 %v1187, %v1186
    %v1220 = vpack.c.b16 %v1189, %v1188
    %v1221 = vpack.c.b16 %v1191, %v1190
    %v1222 = vpack.c.b16 %v1193, %v1192
    %v1223 = vpack.c.b16 %v1195, %v1194
    %v1224 = vpack.c.b16 %v1197, %v1196
    %v1225 = vpack.c.b16 %v1199, %v1198
    %v1226 = vpack.c.b16 %v1201, %v1200
    %v1227 = vpack.c.b16 %v1203, %v1202
    %1252 = vmatprep.subr.bf16.mxu0 0
    %1253 = vmatpush1.bf16.msra.mxu0 %v1204
    %1254 = vmatprep.subr.bf16.mxu0 0
    %1255 = vmatpush1.bf16.msra.mxu0 %v1205
    %1256 = vmatprep.subr.bf16.mxu0 0
    %1257 = vmatpush1.bf16.msra.mxu0 %v1206
    %1258 = vmatprep.subr.bf16.mxu0 0
    %1259 = vmatpush1.bf16.msra.mxu0 %v1207
    %1260 = vmatprep.subr.bf16.mxu0 0
    %1261 = vmatpush1.bf16.msra.mxu0 %v1208
    %1262 = vmatprep.subr.bf16.mxu0 0
    %1263 = vmatpush1.bf16.msra.mxu0 %v1209
    %1264 = vmatprep.subr.bf16.mxu0 0
    %1265 = vmatpush1.bf16.msra.mxu0 %v1210
    %1266 = vmatprep.subr.bf16.mxu0 0
    %1267 = vmatpush1.bf16.msra.mxu0 %v1211
    %1268 = vmatprep.subr.bf16.mxu0 0
    %1269 = vmatpush1.bf16.msra.mxu0 %v1212
    %1270 = vmatprep.subr.bf16.mxu0 0
    %1271 = vmatpush1.bf16.msra.mxu0 %v1213
    %1272 = vmatprep.subr.bf16.mxu0 0
    %1273 = vmatpush1.bf16.msra.mxu0 %v1214
    %1274 = vmatprep.subr.bf16.mxu0 0
    %1275 = vmatpush1.bf16.msra.mxu0 %v1215
    %1276 = vmatprep.subr.bf16.mxu0 0
    %1277 = vmatpush1.bf16.msra.mxu0 %v1216
    %1278 = vmatprep.subr.bf16.mxu0 0
    %1279 = vmatpush1.bf16.msra.mxu0 %v1217
    %1280 = vmatprep.subr.bf16.mxu0 0
    %1281 = vmatpush1.bf16.msra.mxu0 %v1218
    %1282 = vmatprep.subr.bf16.mxu0 0
    %1283 = vmatpush1.bf16.msra.mxu0 %v1219
    %1284 = vmatprep.mubr.bf16.mxu0 %v1051
    %1285 = vmatmul.mubr.bf16.gmra.mrb[0].mxu0 %v1050
    %v1286 = vpop.f32.mrb[0].mxu0
    %v1287 = vadd.f32 %v1106, %v1286
    %v1288 = vpop.f32.mrb[0].mxu0
    %v1289 = vpop.f32.mrb[0].mxu0
    %v1290 = vpop.f32.mrb[0].mxu0
    %1291 = vdwg.mxu0
    %1292 = vmatprep.subr.bf16.mxu0 0
    %1293 = vmatpush1.bf16.msra.mxu0 %v1220
    %1294 = vmatprep.subr.bf16.mxu0 0
    %1295 = vmatpush1.bf16.msra.mxu0 %v1221
    %1296 = vmatprep.subr.bf16.mxu0 0
    %1297 = vmatpush1.bf16.msra.mxu0 %v1222
    %1298 = vmatprep.subr.bf16.mxu0 0
    %1299 = vmatpush1.bf16.msra.mxu0 %v1223
    %1300 = vmatprep.subr.bf16.mxu0 0
    %1301 = vmatpush1.bf16.msra.mxu0 %v1224
    %1302 = vmatprep.subr.bf16.mxu0 0
    %1303 = vmatpush1.bf16.msra.mxu0 %v1225
    %1304 = vmatprep.subr.bf16.mxu0 0
    %1305 = vmatpush1.bf16.msra.mxu0 %v1226
    %1306 = vmatprep.subr.bf16.mxu0 0
    %1307 = vmatpush1.bf16.msra.mxu0 %v1227
    %1308 = vmatprep.subr.bf16.mxu0 0
    %1309 = vmatpush1.bf16.msra.mxu0 0
    %1310 = vmatprep.subr.bf16.mxu0 0
    %1311 = vmatpush1.bf16.msra.mxu0 0
    %1312 = vmatprep.subr.bf16.mxu0 0
    %1313 = vmatpush1.bf16.msra.mxu0 0
    %1314 = vmatprep.subr.bf16.mxu0 0
    %1315 = vmatpush1.bf16.msra.mxu0 0
    %1316 = vmatprep.subr.bf16.mxu0 0
    %1317 = vmatpush1.bf16.msra.mxu0 0
    %1318 = vmatprep.subr.bf16.mxu0 0
    %1319 = vmatpush1.bf16.msra.mxu0 0
    %1320 = vmatprep.subr.bf16.mxu0 0
    %1321 = vmatpush1.bf16.msra.mxu0 0
    %1322 = vmatprep.subr.bf16.mxu0 0
    %1323 = vmatpush1.bf16.msra.mxu0 0
    %1324 = vmatprep.mubr.bf16.mxu0 0
    %1325 = vmatmul.mubr.bf16.gmra.mrb[0].mxu0 %v1052
    %v1326 = vpop.f32.mrb[0].mxu0
    %v1327 = vadd.f32 %v1287, %v1326
    %v1328 = vpop.f32.mrb[0].mxu0
    %v1329 = vpop.f32.mrb[0].mxu0
    %v1330 = vpop.f32.mrb[0].mxu0
    %1331 = vdwg.mxu0
    %v1332 = vtanh.pop %v1327
    %v1333 = vstv %s85
    %v1334 = vmul.f32 %v1332, %v1333
    %1335 = vst [vmem:[#allocation11] sm:$0xff] %v1334
    // Predicated region
    $region50: #{tpu_custom_call.1} parent=1 // pred_check
      _
    $region51: #{tpu_custom_call.1} parent=1 // pred_check_branch
      %1337 = sbr.rel (0) target = $region53
    $region52: #{tpu_custom_call.1} parent=1 // pred_region
      %s1339 = ssub.s32 128, 128
      %1340 = vsyncadd [#allocation5], %s1339
      %s1342 = sshll.u32 [#allocation11], 4
      %s1343 = int_to_ptr.vmem [resolvable:$true] %s1342
      %1345 = dma.vmem_to_hbm [thread:$0]  %s1343, 128, %s8, [#allocation5]
    $region53: #{tpu_custom_call.1} parent=1 // pred_fallthru
      _
    // Predicated region
    $region54: #{tpu_custom_call.1} parent=1 // pred_check
      _
    $region55: #{tpu_custom_call.1} parent=1 // pred_check_branch
      %1347 = sbr.rel (0) target = $region57
    $region56: #{tpu_custom_call.1} parent=1 // pred_region
      %1348 = dma.done [#allocation5], 128
    $region57: #{tpu_custom_call.1} parent=1 // pred_fallthru
      _
    %1349 = vsyncpa [#allocation4], 1
    %1350 = vsyncpa [#allocation7], 1
    %1351 = vsyncpa [#allocation10], 1
    %1352 = vsyncpa [#allocation5], 1

</llo_original>
